<compile_context>
chip_gen: v6e
topology: v6e:2x2x1
jax: 0.10.0
libtpu: 0.0.40
codegen_flags: <defaults>
</compile_context>

<pallas_src>
import jax
import jax.numpy as jnp
from jax.experimental import pallas as pl
from jax.experimental.pallas import tpu as pltpu

IN_DIM = 28 * 28          # 784 (multiple of 8; block last dim == full dim is legal)
HID_DIM = 200
OUT_DIM = 10
HID_PAD = 256             # 200 -> 2*128 (dense vregs / full MXU tiles)
OUT_PAD = 128             # 10  -> 128  (lane-dense output store)
EPS = 1e-5
MAX_TILE_B = 1024         # double-buffered f32 x tile stays under v5e's 16 MiB scoped VMEM


def _round_up(x, m):
    return (x + m - 1) // m * m


def _pad2d(a, rows, cols, dtype):
    a = a.astype(dtype)
    return jnp.pad(a, ((0, rows - a.shape[0]), (0, cols - a.shape[1])))


def mlp_kernel(x_ref,
               w0_ref, t0_ref,
               w1_ref, t1_ref,
               w2_ref, t2_ref,
               w3_ref, t3_ref,
               wf_ref, bf_ref,
               o_ref):
    def hidden(h, w_ref, t_ref):
        z = jnp.dot(h, w_ref[...], preferred_element_type=jnp.float32)
        z = z + t_ref[...]                      # folded Linear-bias + BN shift (scale is in w)
        z = jnp.maximum(z, 0.0)                 # ReLU
        return z.astype(jnp.bfloat16)           # bf16 back onto the MXU

    h = x_ref[...].astype(jnp.bfloat16)         # unpadded f32 x tile -> bf16 in-kernel
    h = hidden(h, w0_ref, t0_ref)
    h = hidden(h, w1_ref, t1_ref)
    h = hidden(h, w2_ref, t2_ref)
    h = hidden(h, w3_ref, t3_ref)
    out = jnp.dot(h, wf_ref[...], preferred_element_type=jnp.float32) + bf_ref[...]
    o_ref[...] = out                            # lane-dense (tile_b, 128) f32 store


def prepare_params(params):
    """Fold eval-mode BN (scale into weights, shift additive), pad, cast to bf16.

    Call once; result is reused across forward calls (no per-call fold cost).
    """
    def fold(layer, in_pad, out_pad):
        w, b, gamma, beta, mean, var = layer
        scale = gamma * jax.lax.rsqrt(var + EPS)             # (out,)
        w_scaled = w * scale[None, :]                        # BN scale folded into weights (f32)
        shift = (b - mean) * scale + beta                    # (out,)
        w_p = _pad2d(w_scaled, in_pad, out_pad, jnp.bfloat16)
        t_p = _pad2d(shift[None, :], 1, out_pad, jnp.float32)
        return w_p, t_p

    w0, t0 = fold(params["l0"], IN_DIM, HID_PAD)   # no column pad of x: w0 rows stay 784
    w1, t1 = fold(params["l1"], HID_PAD, HID_PAD)
    w2, t2 = fold(params["l2"], HID_PAD, HID_PAD)
    w3, t3 = fold(params["l3"], HID_PAD, HID_PAD)
    wf, bf = params["final"]
    wf_p = _pad2d(wf, HID_PAD, OUT_PAD, jnp.bfloat16)
    bf_p = _pad2d(bf[None, :], 1, OUT_PAD, jnp.float32)
    return (w0, t0, w1, t1, w2, t2, w3, t3, wf_p, bf_p)


def _choose_batch_tiling(B):
    b_pad = _round_up(B, 16)                  # bf16 sublane packing granularity
    if b_pad <= 256:
        return b_pad, b_pad                   # tiny batch: one grid step
    # Keep >= 2 grid steps (v7x megacore), tiles rounded to 256 rows (MXU M granularity).
    tile_b = min(MAX_TILE_B, _round_up(pl.cdiv(b_pad, 2), 256))
    b_pad = _round_up(b_pad, tile_b)
    return b_pad, tile_b


def base_forward(x, prepared):
    """x: (B, 784) float32 -> (B, 10) float32."""
    B = x.shape[0]
    b_pad, tile_b = _choose_batch_tiling(B)
    # Single fused row-pad; x stays f32 (no wrapper cast/copy pass).
    x_p = x if b_pad == B else jnp.pad(x, ((0, b_pad - B), (0, 0)))

    const2 = lambda i: (0, 0)                 # weights/shifts stay VMEM-resident
    vec_spec = pl.BlockSpec((1, HID_PAD), const2)

    in_specs = [pl.BlockSpec((tile_b, IN_DIM), lambda i: (i, 0)),   # unpadded f32 x
                pl.BlockSpec((IN_DIM, HID_PAD), const2), vec_spec]
    for _ in range(3):
        in_specs += [pl.BlockSpec((HID_PAD, HID_PAD), const2), vec_spec]
    in_specs += [pl.BlockSpec((HID_PAD, OUT_PAD), const2),
                 pl.BlockSpec((1, OUT_PAD), const2)]

    out = pl.pallas_call(
        mlp_kernel,
        out_shape=jax.ShapeDtypeStruct((b_pad, OUT_PAD), jnp.float32),
        grid=(b_pad // tile_b,),
        in_specs=in_specs,
        out_specs=pl.BlockSpec((tile_b, OUT_PAD), lambda i: (i, 0)),
        compiler_params=pltpu.CompilerParams(
            dimension_semantics=("parallel",)),   # v7x: shard batch tiles over 2 TCs
    )(x_p, *prepared)
    return out[:B, :OUT_DIM]


def reference_forward(x, params):
    """Pure-JAX f32 reference (eval-mode BN) for a correctness sanity check."""
    h = x
    for i in range(4):
        w, b, gamma, beta, mean, var = params[f"l{i}"]
        z = h @ w + b
        z = (z - mean) * (gamma * jax.lax.rsqrt(var + EPS)) + beta
        h = jnp.maximum(z, 0.0)
    wf, bf = params["final"]
    return h @ wf + bf


def init_params(key):
    """Deterministic synthetic parameters matching the PyTorch module shapes."""
    def linear(key, fan_in, fan_out):
        kw, kb = jax.random.split(key)
        bound = 1.0 / jnp.sqrt(fan_in)
        w = jax.random.uniform(kw, (fan_in, fan_out), jnp.float32, -bound, bound)
        b = jax.random.uniform(kb, (fan_out,), jnp.float32, -bound, bound)
        return w, b

    def bn(key, n):
        k1, k2, k3, k4 = jax.random.split(key, 4)
        gamma = 1.0 + 0.1 * jax.random.normal(k1, (n,), jnp.float32)
        beta = 0.1 * jax.random.normal(k2, (n,), jnp.float32)
        mean = 0.1 * jax.random.normal(k3, (n,), jnp.float32)
        var = 1.0 + 0.1 * jax.random.uniform(k4, (n,), jnp.float32)
        return gamma, beta, mean, var

    keys = jax.random.split(key, 9)
    params = {}
    dims = [(IN_DIM, HID_DIM), (HID_DIM, HID_DIM), (HID_DIM, HID_DIM), (HID_DIM, HID_DIM)]
    for i, (fi, fo) in enumerate(dims):
        w, b = linear(keys[2 * i], fi, fo)
        g, be, m, v = bn(keys[2 * i + 1], fo)
        params[f"l{i}"] = (w, b, g, be, m, v)
    wf, bf = linear(keys[8], HID_DIM, OUT_DIM)
    params["final"] = (wf, bf)
    return params


if __name__ == "__main__":
    key = jax.random.PRNGKey(0)
    kx, kp = jax.random.split(key)
    B = 8
    x = jax.random.normal(kx, (B, IN_DIM), jnp.float32)

    params = init_params(kp)
    prepared = prepare_params(params)      # fold/pad/cast once, not per call

    out = base_forward(x, prepared)
    out = jax.block_until_ready(out)
    assert out.shape == (B, OUT_DIM) and out.dtype == jnp.float32
    assert bool(jnp.all(jnp.isfinite(out)))

    # Loose tolerance: the kernel runs the 5-layer chain in bf16 on the MXU.
    ref = reference_forward(x, params)
    err = float(jnp.max(jnp.abs(out - ref)))
    scale = float(jnp.max(jnp.abs(ref)))
    assert err <= 0.1 * scale + 0.05, (err, scale)

    print("KERNEL_OK")
</pallas_src>

<mosaic_0001>
module attributes {stable_mosaic.version = 11 : i64} {
  func.func @mlp_kernel(%arg0: i32, %arg1: memref<16x784xf32, #tpu.memory_space<vmem>>, %arg2: memref<784x256xbf16, #tpu.memory_space<vmem>>, %arg3: memref<1x256xf32, #tpu.memory_space<vmem>>, %arg4: memref<256x256xbf16, #tpu.memory_space<vmem>>, %arg5: memref<1x256xf32, #tpu.memory_space<vmem>>, %arg6: memref<256x256xbf16, #tpu.memory_space<vmem>>, %arg7: memref<1x256xf32, #tpu.memory_space<vmem>>, %arg8: memref<256x256xbf16, #tpu.memory_space<vmem>>, %arg9: memref<1x256xf32, #tpu.memory_space<vmem>>, %arg10: memref<256x128xbf16, #tpu.memory_space<vmem>>, %arg11: memref<1x128xf32, #tpu.memory_space<vmem>>, %arg12: memref<16x128xf32, #tpu.memory_space<vmem>>) attributes {dimension_semantics = [#tpu.dimension_semantics<parallel>], iteration_bounds = array<i64: 1>, scalar_prefetch = 0 : i64, scratch_operands = 0 : i64, tpu.core_type = #tpu.core_type<tc>, window_params = [{transform_indices = @transform_0, window_bounds = array<i64: 16, 784>}, {pipeline_mode = #tpu.pipeline_mode<synchronous>, transform_indices = @transform_1, window_bounds = array<i64: 784, 256>}, {pipeline_mode = #tpu.pipeline_mode<synchronous>, transform_indices = @transform_2, window_bounds = array<i64: 1, 256>}, {pipeline_mode = #tpu.pipeline_mode<synchronous>, transform_indices = @transform_3, window_bounds = array<i64: 256, 256>}, {pipeline_mode = #tpu.pipeline_mode<synchronous>, transform_indices = @transform_4, window_bounds = array<i64: 1, 256>}, {pipeline_mode = #tpu.pipeline_mode<synchronous>, transform_indices = @transform_5, window_bounds = array<i64: 256, 256>}, {pipeline_mode = #tpu.pipeline_mode<synchronous>, transform_indices = @transform_6, window_bounds = array<i64: 1, 256>}, {pipeline_mode = #tpu.pipeline_mode<synchronous>, transform_indices = @transform_7, window_bounds = array<i64: 256, 256>}, {pipeline_mode = #tpu.pipeline_mode<synchronous>, transform_indices = @transform_8, window_bounds = array<i64: 1, 256>}, {pipeline_mode = #tpu.pipeline_mode<synchronous>, transform_indices = @transform_9, window_bounds = array<i64: 256, 128>}, {pipeline_mode = #tpu.pipeline_mode<synchronous>, transform_indices = @transform_10, window_bounds = array<i64: 1, 128>}, {transform_indices = @transform_11, window_bounds = array<i64: 16, 128>}]} {
    %c0 = arith.constant 0 : index
    %c0_0 = arith.constant 0 : index
    %0 = vector.load %arg1[%c0, %c0_0] : memref<16x784xf32, #tpu.memory_space<vmem>>, vector<16x784xf32>
    %1 = arith.truncf %0 : vector<16x784xf32> to vector<16x784xbf16>
    %c0_1 = arith.constant 0 : index
    %c0_2 = arith.constant 0 : index
    %2 = vector.load %arg2[%c0_1, %c0_2] : memref<784x256xbf16, #tpu.memory_space<vmem>>, vector<784x256xbf16>
    %cst = arith.constant dense<0.000000e+00> : vector<16x256xf32>
    %3 = tpu.matmul %1, %2, %cst {dimension_numbers = #tpu.dot_dimension_numbers<[1], [0], [0], [1], [0, 0, 1, 1], [], []>} : vector<16x784xbf16>, vector<784x256xbf16>, vector<16x256xf32> -> vector<16x256xf32>
    %c0_3 = arith.constant 0 : index
    %c0_4 = arith.constant 0 : index
    %4 = vector.load %arg3[%c0_3, %c0_4] : memref<1x256xf32, #tpu.memory_space<vmem>>, vector<1x256xf32>
    %5 = vector.broadcast %4 : vector<1x256xf32> to vector<16x256xf32>
    %6 = arith.addf %3, %5 : vector<16x256xf32>
    %cst_5 = arith.constant 0.000000e+00 : f32
    %7 = vector.broadcast %cst_5 : f32 to vector<16x256xf32>
    %8 = arith.maximumf %6, %7 : vector<16x256xf32>
    %9 = arith.truncf %8 : vector<16x256xf32> to vector<16x256xbf16>
    %c0_6 = arith.constant 0 : index
    %c0_7 = arith.constant 0 : index
    %10 = vector.load %arg4[%c0_6, %c0_7] : memref<256x256xbf16, #tpu.memory_space<vmem>>, vector<256x256xbf16>
    %cst_8 = arith.constant dense<0.000000e+00> : vector<16x256xf32>
    %11 = tpu.matmul %9, %10, %cst_8 {dimension_numbers = #tpu.dot_dimension_numbers<[1], [0], [0], [1], [0, 0, 1, 1], [], []>} : vector<16x256xbf16>, vector<256x256xbf16>, vector<16x256xf32> -> vector<16x256xf32>
    %c0_9 = arith.constant 0 : index
    %c0_10 = arith.constant 0 : index
    %12 = vector.load %arg5[%c0_9, %c0_10] : memref<1x256xf32, #tpu.memory_space<vmem>>, vector<1x256xf32>
    %13 = vector.broadcast %12 : vector<1x256xf32> to vector<16x256xf32>
    %14 = arith.addf %11, %13 : vector<16x256xf32>
    %cst_11 = arith.constant 0.000000e+00 : f32
    %15 = vector.broadcast %cst_11 : f32 to vector<16x256xf32>
    %16 = arith.maximumf %14, %15 : vector<16x256xf32>
    %17 = arith.truncf %16 : vector<16x256xf32> to vector<16x256xbf16>
    %c0_12 = arith.constant 0 : index
    %c0_13 = arith.constant 0 : index
    %18 = vector.load %arg6[%c0_12, %c0_13] : memref<256x256xbf16, #tpu.memory_space<vmem>>, vector<256x256xbf16>
    %cst_14 = arith.constant dense<0.000000e+00> : vector<16x256xf32>
    %19 = tpu.matmul %17, %18, %cst_14 {dimension_numbers = #tpu.dot_dimension_numbers<[1], [0], [0], [1], [0, 0, 1, 1], [], []>} : vector<16x256xbf16>, vector<256x256xbf16>, vector<16x256xf32> -> vector<16x256xf32>
    %c0_15 = arith.constant 0 : index
    %c0_16 = arith.constant 0 : index
    %20 = vector.load %arg7[%c0_15, %c0_16] : memref<1x256xf32, #tpu.memory_space<vmem>>, vector<1x256xf32>
    %21 = vector.broadcast %20 : vector<1x256xf32> to vector<16x256xf32>
    %22 = arith.addf %19, %21 : vector<16x256xf32>
    %cst_17 = arith.constant 0.000000e+00 : f32
    %23 = vector.broadcast %cst_17 : f32 to vector<16x256xf32>
    %24 = arith.maximumf %22, %23 : vector<16x256xf32>
    %25 = arith.truncf %24 : vector<16x256xf32> to vector<16x256xbf16>
    %c0_18 = arith.constant 0 : index
    %c0_19 = arith.constant 0 : index
    %26 = vector.load %arg8[%c0_18, %c0_19] : memref<256x256xbf16, #tpu.memory_space<vmem>>, vector<256x256xbf16>
    %cst_20 = arith.constant dense<0.000000e+00> : vector<16x256xf32>
    %27 = tpu.matmul %25, %26, %cst_20 {dimension_numbers = #tpu.dot_dimension_numbers<[1], [0], [0], [1], [0, 0, 1, 1], [], []>} : vector<16x256xbf16>, vector<256x256xbf16>, vector<16x256xf32> -> vector<16x256xf32>
    %c0_21 = arith.constant 0 : index
    %c0_22 = arith.constant 0 : index
    %28 = vector.load %arg9[%c0_21, %c0_22] : memref<1x256xf32, #tpu.memory_space<vmem>>, vector<1x256xf32>
    %29 = vector.broadcast %28 : vector<1x256xf32> to vector<16x256xf32>
    %30 = arith.addf %27, %29 : vector<16x256xf32>
    %cst_23 = arith.constant 0.000000e+00 : f32
    %31 = vector.broadcast %cst_23 : f32 to vector<16x256xf32>
    %32 = arith.maximumf %30, %31 : vector<16x256xf32>
    %33 = arith.truncf %32 : vector<16x256xf32> to vector<16x256xbf16>
    %c0_24 = arith.constant 0 : index
    %c0_25 = arith.constant 0 : index
    %34 = vector.load %arg10[%c0_24, %c0_25] : memref<256x128xbf16, #tpu.memory_space<vmem>>, vector<256x128xbf16>
    %cst_26 = arith.constant dense<0.000000e+00> : vector<16x128xf32>
    %35 = tpu.matmul %33, %34, %cst_26 {dimension_numbers = #tpu.dot_dimension_numbers<[1], [0], [0], [1], [0, 0, 1, 1], [], []>} : vector<16x256xbf16>, vector<256x128xbf16>, vector<16x128xf32> -> vector<16x128xf32>
    %c0_27 = arith.constant 0 : index
    %c0_28 = arith.constant 0 : index
    %36 = vector.load %arg11[%c0_27, %c0_28] : memref<1x128xf32, #tpu.memory_space<vmem>>, vector<1x128xf32>
    %37 = vector.broadcast %36 : vector<1x128xf32> to vector<16x128xf32>
    %38 = arith.addf %35, %37 : vector<16x128xf32>
    %c0_29 = arith.constant 0 : index
    %c0_30 = arith.constant 0 : index
    %39 = vector.load %arg12[%c0_29, %c0_30] : memref<16x128xf32, #tpu.memory_space<vmem>>, vector<16x128xf32>
    tpu.vector_store %arg12[%c0_29, %c0_30], %38 {strides = array<i32>} : memref<16x128xf32, #tpu.memory_space<vmem>>, vector<16x128xf32>,
    return
  }
  func.func @transform_0(%arg0: i32) -> (i32, i32) {
    %c0_i32 = arith.constant 0 : i32
    %c0_i32_0 = arith.constant 0 : i32
    return %arg0, %c0_i32 : i32, i32
  }
  func.func @transform_1(%arg0: i32) -> (i32, i32) {
    %c0_i32 = arith.constant 0 : i32
    %c0_i32_0 = arith.constant 0 : i32
    %c0_i32_1 = arith.constant 0 : i32
    return %c0_i32, %c0_i32_0 : i32, i32
  }
  func.func @transform_2(%arg0: i32) -> (i32, i32) {
    %c0_i32 = arith.constant 0 : i32
    %c0_i32_0 = arith.constant 0 : i32
    %c0_i32_1 = arith.constant 0 : i32
    return %c0_i32, %c0_i32_0 : i32, i32
  }
  func.func @transform_3(%arg0: i32) -> (i32, i32) {
    %c0_i32 = arith.constant 0 : i32
    %c0_i32_0 = arith.constant 0 : i32
    %c0_i32_1 = arith.constant 0 : i32
    return %c0_i32, %c0_i32_0 : i32, i32
  }
  func.func @transform_4(%arg0: i32) -> (i32, i32) {
    %c0_i32 = arith.constant 0 : i32
    %c0_i32_0 = arith.constant 0 : i32
    %c0_i32_1 = arith.constant 0 : i32
    return %c0_i32, %c0_i32_0 : i32, i32
  }
  func.func @transform_5(%arg0: i32) -> (i32, i32) {
    %c0_i32 = arith.constant 0 : i32
    %c0_i32_0 = arith.constant 0 : i32
    %c0_i32_1 = arith.constant 0 : i32
    return %c0_i32, %c0_i32_0 : i32, i32
  }
  func.func @transform_6(%arg0: i32) -> (i32, i32) {
    %c0_i32 = arith.constant 0 : i32
    %c0_i32_0 = arith.constant 0 : i32
    %c0_i32_1 = arith.constant 0 : i32
    return %c0_i32, %c0_i32_0 : i32, i32
  }
  func.func @transform_7(%arg0: i32) -> (i32, i32) {
    %c0_i32 = arith.constant 0 : i32
    %c0_i32_0 = arith.constant 0 : i32
    %c0_i32_1 = arith.constant 0 : i32
    return %c0_i32, %c0_i32_0 : i32, i32
  }
  func.func @transform_8(%arg0: i32) -> (i32, i32) {
    %c0_i32 = arith.constant 0 : i32
    %c0_i32_0 = arith.constant 0 : i32
    %c0_i32_1 = arith.constant 0 : i32
    return %c0_i32, %c0_i32_0 : i32, i32
  }
  func.func @transform_9(%arg0: i32) -> (i32, i32) {
    %c0_i32 = arith.constant 0 : i32
    %c0_i32_0 = arith.constant 0 : i32
    %c0_i32_1 = arith.constant 0 : i32
    return %c0_i32, %c0_i32_0 : i32, i32
  }
  func.func @transform_10(%arg0: i32) -> (i32, i32) {
    %c0_i32 = arith.constant 0 : i32
    %c0_i32_0 = arith.constant 0 : i32
    %c0_i32_1 = arith.constant 0 : i32
    return %c0_i32, %c0_i32_0 : i32, i32
  }
  func.func @transform_11(%arg0: i32) -> (i32, i32) {
    %c0_i32 = arith.constant 0 : i32
    %c0_i32_0 = arith.constant 0 : i32
    return %arg0, %c0_i32 : i32, i32
  }
}

</mosaic_0001>

<llo_original>
// kernel: tpu_custom_call.1
$region0: #{tpu_custom_call.1}
  #allocation0 [shape = 'u32[]', space=smem, size = 0x4, offset = 0x4, fixed_abs, tag = 'smem constant byte address 0x4 - core index']
  #allocation1 [shape = 'u32[144,128]{1,0:T(1,128)}', space=vmem, size = 0x12000, scoped, tag = 'internal scratch']
  %s0 = inlined_call_operand.hbm [shape: f32[16,784], index: 0, kind: input, shape index: {}]
  %s1 = inlined_call_operand.hbm [shape: bf16[784,256], index: 1, kind: input, shape index: {}]
  %s2 = inlined_call_operand.vmem [shape: f32[1,256], index: 2, kind: input, shape index: {}]
  %s3 = inlined_call_operand.hbm [shape: bf16[256,256], index: 3, kind: input, shape index: {}]
  %s4 = inlined_call_operand.vmem [shape: f32[1,256], index: 4, kind: input, shape index: {}]
  %s5 = inlined_call_operand.hbm [shape: bf16[256,256], index: 5, kind: input, shape index: {}]
  %s6 = inlined_call_operand.vmem [shape: f32[1,256], index: 6, kind: input, shape index: {}]
  %s7 = inlined_call_operand.hbm [shape: bf16[256,256], index: 7, kind: input, shape index: {}]
  %s8 = inlined_call_operand.vmem [shape: f32[1,256], index: 8, kind: input, shape index: {}]
  %s9 = inlined_call_operand.hbm [shape: bf16[256,128], index: 9, kind: input, shape index: {}]
  %s10 = inlined_call_operand.vmem [shape: f32[1,128], index: 10, kind: input, shape index: {}]
  %s11 = inlined_call_operand.hbm [shape: f32[16,128], index: 11, kind: output, shape index: {}]
  %s12 = sld [smem:[#allocation0]]
  $region78: #{tpu_custom_call.1} parent=0
    _
  %s14 = ssub.s32 1, %s12
  %s15 = scalar_select 0, %s14, %s12
  $region1: #{tpu_custom_call.1} parent=0
    #allocation2 [shape = 'u8[57344]{0}', space=vmem, size = 0xe000, scoped, tag = 'input window, operand 0, single buffered']
    #allocation3 [shape = 's32[1]{0}', space=sflag, size = 0x4, scoped, tag = 'scoped memory for tpu_custom_call.1']
    #allocation4 [shape = 's32[1]{0}', space=sflag, size = 0x4, scoped, tag = 'scoped memory for tpu_custom_call.1']
    #allocation5 [shape = 'u8[401408]{0}', space=vmem, size = 0x62000, scoped, tag = 'input window, operand 1, single buffered']
    #allocation6 [shape = 's32[1]{0}', space=sflag, size = 0x4, scoped, tag = 'scoped memory for tpu_custom_call.1']
    #allocation7 [shape = 'u8[131072]{0}', space=vmem, size = 0x20000, scoped, tag = 'input window, operand 3, single buffered']
    #allocation8 [shape = 'u8[131072]{0}', space=vmem, size = 0x20000, scoped, tag = 'input window, operand 5, single buffered']
    #allocation9 [shape = 's32[1]{0}', space=sflag, size = 0x4, scoped, tag = 'scoped memory for tpu_custom_call.1']
    #allocation10 [shape = 'u8[131072]{0}', space=vmem, size = 0x20000, scoped, tag = 'input window, operand 7, single buffered']
    #allocation11 [shape = 'u8[65536]{0}', space=vmem, size = 0x10000, scoped, tag = 'input window, operand 9, single buffered']
    #allocation12 [shape = 's32[1]{0}', space=sflag, size = 0x4, scoped, tag = 'scoped memory for tpu_custom_call.1']
    #allocation13 [shape = 'u8[8192]{0}', space=vmem, size = 0x2000, scoped, tag = 'output window, operand 0, single buffered']
    %16 = vsyncpa [#allocation3], 0
    %17 = vsyncpa [#allocation6], 0
    %18 = vsyncpa [#allocation9], 0
    %19 = vsyncpa [#allocation12], 0
    %20 = vsyncpa [#allocation4], 0
    // Predicated region
    $region2: #{tpu_custom_call.1} parent=1 // pred_check
      _
    $region3: #{tpu_custom_call.1} parent=1 // pred_check_branch
      %22 = sbr.rel (0) target = $region5
    $region4: #{tpu_custom_call.1} parent=1 // pred_region
      %s24 = ssub.s32 1792, 1792
      %25 = vsyncadd [#allocation3], %s24
      %s26 = sshll.u32 [#allocation2], 4
      %s27 = int_to_ptr.vmem [resolvable:$true] %s26
      %32 = dma.hbm_to_vmem [thread:$0]  %s0, 1792, %s27, [#allocation3], 896, 896, 56
    $region5: #{tpu_custom_call.1} parent=1 // pred_fallthru
      _
    // Predicated region
    $region6: #{tpu_custom_call.1} parent=1 // pred_check
      _
    $region7: #{tpu_custom_call.1} parent=1 // pred_check_branch
      %34 = sbr.rel (0) target = $region9
    $region8: #{tpu_custom_call.1} parent=1 // pred_region
      %s36 = ssub.s32 12544, 12544
      %37 = vsyncadd [#allocation6], %s36
      %s38 = sshll.u32 [#allocation5], 4
      %s39 = int_to_ptr.vmem [resolvable:$true] %s38
      %44 = dma.hbm_to_vmem [thread:$0]  %s1, 12544, %s39, [#allocation6], 128, 128, 8
    $region9: #{tpu_custom_call.1} parent=1 // pred_fallthru
      _
    // Predicated region
    $region10: #{tpu_custom_call.1} parent=1 // pred_check
      _
    $region11: #{tpu_custom_call.1} parent=1 // pred_check_branch
      %46 = sbr.rel (0) target = $region13
    $region12: #{tpu_custom_call.1} parent=1 // pred_region
      _
    $region13: #{tpu_custom_call.1} parent=1 // pred_fallthru
      _
    // Predicated region
    $region14: #{tpu_custom_call.1} parent=1 // pred_check
      _
    $region15: #{tpu_custom_call.1} parent=1 // pred_check_branch
      %48 = sbr.rel (0) target = $region17
    $region16: #{tpu_custom_call.1} parent=1 // pred_region
      %s50 = ssub.s32 4096, 4096
      %51 = vsyncadd [#allocation6], %s50
      %s52 = sshll.u32 [#allocation7], 4
      %s53 = int_to_ptr.vmem [resolvable:$true] %s52
      %58 = dma.hbm_to_vmem [thread:$0]  %s3, 4096, %s53, [#allocation6], 128, 128, 8
    $region17: #{tpu_custom_call.1} parent=1 // pred_fallthru
      _
    // Predicated region
    $region18: #{tpu_custom_call.1} parent=1 // pred_check
      _
    $region19: #{tpu_custom_call.1} parent=1 // pred_check_branch
      %60 = sbr.rel (0) target = $region21
    $region20: #{tpu_custom_call.1} parent=1 // pred_region
      _
    $region21: #{tpu_custom_call.1} parent=1 // pred_fallthru
      _
    // Predicated region
    $region22: #{tpu_custom_call.1} parent=1 // pred_check
      _
    $region23: #{tpu_custom_call.1} parent=1 // pred_check_branch
      %62 = sbr.rel (0) target = $region25
    $region24: #{tpu_custom_call.1} parent=1 // pred_region
      %s64 = ssub.s32 4096, 4096
      %65 = vsyncadd [#allocation9], %s64
      %s66 = sshll.u32 [#allocation8], 4
      %s67 = int_to_ptr.vmem [resolvable:$true] %s66
      %72 = dma.hbm_to_vmem [thread:$0]  %s5, 4096, %s67, [#allocation9], 128, 128, 8
    $region25: #{tpu_custom_call.1} parent=1 // pred_fallthru
      _
    // Predicated region
    $region26: #{tpu_custom_call.1} parent=1 // pred_check
      _
    $region27: #{tpu_custom_call.1} parent=1 // pred_check_branch
      %74 = sbr.rel (0) target = $region29
    $region28: #{tpu_custom_call.1} parent=1 // pred_region
      _
    $region29: #{tpu_custom_call.1} parent=1 // pred_fallthru
      _
    // Predicated region
    $region30: #{tpu_custom_call.1} parent=1 // pred_check
      _
    $region31: #{tpu_custom_call.1} parent=1 // pred_check_branch
      %76 = sbr.rel (0) target = $region33
    $region32: #{tpu_custom_call.1} parent=1 // pred_region
      %s78 = ssub.s32 4096, 4096
      %79 = vsyncadd [#allocation9], %s78
      %s80 = sshll.u32 [#allocation10], 4
      %s81 = int_to_ptr.vmem [resolvable:$true] %s80
      %86 = dma.hbm_to_vmem [thread:$0]  %s7, 4096, %s81, [#allocation9], 128, 128, 8
    $region33: #{tpu_custom_call.1} parent=1 // pred_fallthru
      _
    // Predicated region
    $region34: #{tpu_custom_call.1} parent=1 // pred_check
      _
    $region35: #{tpu_custom_call.1} parent=1 // pred_check_branch
      %88 = sbr.rel (0) target = $region37
    $region36: #{tpu_custom_call.1} parent=1 // pred_region
      _
    $region37: #{tpu_custom_call.1} parent=1 // pred_fallthru
      _
    // Predicated region
    $region38: #{tpu_custom_call.1} parent=1 // pred_check
      _
    $region39: #{tpu_custom_call.1} parent=1 // pred_check_branch
      %90 = sbr.rel (0) target = $region41
    $region40: #{tpu_custom_call.1} parent=1 // pred_region
      %s92 = ssub.s32 2048, 2048
      %93 = vsyncadd [#allocation12], %s92
      %s94 = sshll.u32 [#allocation11], 4
      %s95 = int_to_ptr.vmem [resolvable:$true] %s94
      %100 = dma.hbm_to_vmem [thread:$0]  %s9, 2048, %s95, [#allocation12], 64, 64, 4
    $region41: #{tpu_custom_call.1} parent=1 // pred_fallthru
      _
    // Predicated region
    $region42: #{tpu_custom_call.1} parent=1 // pred_check
      _
    $region43: #{tpu_custom_call.1} parent=1 // pred_check_branch
      %102 = sbr.rel (0) target = $region45
    $region44: #{tpu_custom_call.1} parent=1 // pred_region
      _
    $region45: #{tpu_custom_call.1} parent=1 // pred_fallthru
      _
    // Predicated region
    $region46: #{tpu_custom_call.1} parent=1 // pred_check
      _
    $region47: #{tpu_custom_call.1} parent=1 // pred_check_branch
      %104 = sbr.rel (0) target = $region49
    $region48: #{tpu_custom_call.1} parent=1 // pred_region
      %105 = dma.done [#allocation3], 1792
    $region49: #{tpu_custom_call.1} parent=1 // pred_fallthru
      _
    // Predicated region
    $region50: #{tpu_custom_call.1} parent=1 // pred_check
      _
    $region51: #{tpu_custom_call.1} parent=1 // pred_check_branch
      %107 = sbr.rel (0) target = $region53
    $region52: #{tpu_custom_call.1} parent=1 // pred_region
      %108 = dma.done [#allocation6], 12544
    $region53: #{tpu_custom_call.1} parent=1 // pred_fallthru
      _
    // Predicated region
    $region54: #{tpu_custom_call.1} parent=1 // pred_check
      _
    $region55: #{tpu_custom_call.1} parent=1 // pred_check_branch
      %110 = sbr.rel (0) target = $region57
    $region56: #{tpu_custom_call.1} parent=1 // pred_region
      %111 = dma.done [#allocation6], 4096
    $region57: #{tpu_custom_call.1} parent=1 // pred_fallthru
      _
    // Predicated region
    $region58: #{tpu_custom_call.1} parent=1 // pred_check
      _
    $region59: #{tpu_custom_call.1} parent=1 // pred_check_branch
      %113 = sbr.rel (0) target = $region61
    $region60: #{tpu_custom_call.1} parent=1 // pred_region
      %114 = dma.done [#allocation9], 4096
    $region61: #{tpu_custom_call.1} parent=1 // pred_fallthru
      _
    // Predicated region
    $region62: #{tpu_custom_call.1} parent=1 // pred_check
      _
    $region63: #{tpu_custom_call.1} parent=1 // pred_check_branch
      %116 = sbr.rel (0) target = $region65
    $region64: #{tpu_custom_call.1} parent=1 // pred_region
      %117 = dma.done [#allocation9], 4096
    $region65: #{tpu_custom_call.1} parent=1 // pred_fallthru
      _
    // Predicated region
    $region66: #{tpu_custom_call.1} parent=1 // pred_check
      _
    $region67: #{tpu_custom_call.1} parent=1 // pred_check_branch
      %119 = sbr.rel (0) target = $region69
    $region68: #{tpu_custom_call.1} parent=1 // pred_region
      %120 = dma.done [#allocation12], 2048
    $region69: #{tpu_custom_call.1} parent=1 // pred_fallthru
      _
    %v122 = vld [vmem:[#allocation2] sm:$0xff]
    %v123 = vld [vmem:[#allocation2 + $0x8] sm:$0xff]
    %v124 = vld [vmem:[#allocation2 + $0x10] sm:$0xff]
    %v125 = vld [vmem:[#allocation2 + $0x18] sm:$0xff]
    %v126 = vld [vmem:[#allocation2 + $0x20] sm:$0xff]
    %v127 = vld [vmem:[#allocation2 + $0x28] sm:$0xff]
    %v128 = vld [vmem:[#allocation2 + $0x30] sm:$0xff]
    %v129 = vld [vmem:[#allocation2 + $0x38] sm:$0xff]
    %v130 = vld [vmem:[#allocation2 + $0x40] sm:$0xff]
    %v131 = vld [vmem:[#allocation2 + $0x48] sm:$0xff]
    %v132 = vld [vmem:[#allocation2 + $0x50] sm:$0xff]
    %v133 = vld [vmem:[#allocation2 + $0x58] sm:$0xff]
    %v134 = vld [vmem:[#allocation2 + $0x60] sm:$0xff]
    %v135 = vld [vmem:[#allocation2 + $0x68] sm:$0xff]
    %v136 = vpack.c.bf16 %v129, %v122
    %v137 = vpack.c.bf16 %v130, %v123
    %v138 = vpack.c.bf16 %v131, %v124
    %v139 = vpack.c.bf16 %v132, %v125
    %v140 = vpack.c.bf16 %v133, %v126
    %v141 = vpack.c.bf16 %v134, %v127
    %v142 = vpack.c.bf16 %v135, %v128
    %v143 = vld [vmem:[#allocation5] sm:$0xff]
    %v144 = vld [vmem:[#allocation5 + $0x8] sm:$0xff]
    %v145 = vld [vmem:[#allocation5 + $0x10] sm:$0xff]
    %v146 = vld [vmem:[#allocation5 + $0x18] sm:$0xff]
    %v147 = vld [vmem:[#allocation5 + $0x20] sm:$0xff]
    %v148 = vld [vmem:[#allocation5 + $0x28] sm:$0xff]
    %v149 = vld [vmem:[#allocation5 + $0x30] sm:$0xff]
    %v150 = vld [vmem:[#allocation5 + $0x38] sm:$0xff]
    %v151 = vld [vmem:[#allocation5 + $0x40] sm:$0xff]
    %v152 = vld [vmem:[#allocation5 + $0x48] sm:$0xff]
    %v153 = vld [vmem:[#allocation5 + $0x50] sm:$0xff]
    %v154 = vld [vmem:[#allocation5 + $0x58] sm:$0xff]
    %v155 = vld [vmem:[#allocation5 + $0x60] sm:$0xff]
    %v156 = vld [vmem:[#allocation5 + $0x68] sm:$0xff]
    %v157 = vld [vmem:[#allocation5 + $0x70] sm:$0xff]
    %v158 = vld [vmem:[#allocation5 + $0x78] sm:$0xff]
    %v159 = vld [vmem:[#allocation5 + $0x80] sm:$0xff]
    %v160 = vld [vmem:[#allocation5 + $0x88] sm:$0xff]
    %v161 = vld [vmem:[#allocation5 + $0x90] sm:$0xff]
    %v162 = vld [vmem:[#allocation5 + $0x98] sm:$0xff]
    %v163 = vld [vmem:[#allocation5 + $0xa0] sm:$0xff]
    %v164 = vld [vmem:[#allocation5 + $0xa8] sm:$0xff]
    %v165 = vld [vmem:[#allocation5 + $0xb0] sm:$0xff]
    %v166 = vld [vmem:[#allocation5 + $0xb8] sm:$0xff]
    %v167 = vld [vmem:[#allocation5 + $0xc0] sm:$0xff]
    %v168 = vld [vmem:[#allocation5 + $0xc8] sm:$0xff]
    %v169 = vld [vmem:[#allocation5 + $0xd0] sm:$0xff]
    %v170 = vld [vmem:[#allocation5 + $0xd8] sm:$0xff]
    %v171 = vld [vmem:[#allocation5 + $0xe0] sm:$0xff]
    %v172 = vld [vmem:[#allocation5 + $0xe8] sm:$0xff]
    %v173 = vld [vmem:[#allocation5 + $0xf0] sm:$0xff]
    %v174 = vld [vmem:[#allocation5 + $0xf8] sm:$0xff]
    %v175 = vld [vmem:[#allocation5 + $0x100] sm:$0xff]
    %v176 = vld [vmem:[#allocation5 + $0x108] sm:$0xff]
    %v177 = vld [vmem:[#allocation5 + $0x110] sm:$0xff]
    %v178 = vld [vmem:[#allocation5 + $0x118] sm:$0xff]
    %v179 = vld [vmem:[#allocation5 + $0x120] sm:$0xff]
    %v180 = vld [vmem:[#allocation5 + $0x128] sm:$0xff]
    %v181 = vld [vmem:[#allocation5 + $0x130] sm:$0xff]
    %v182 = vld [vmem:[#allocation5 + $0x138] sm:$0xff]
    %v183 = vld [vmem:[#allocation5 + $0x140] sm:$0xff]
    %v184 = vld [vmem:[#allocation5 + $0x148] sm:$0xff]
    %v185 = vld [vmem:[#allocation5 + $0x150] sm:$0xff]
    %v186 = vld [vmem:[#allocation5 + $0x158] sm:$0xff]
    %v187 = vld [vmem:[#allocation5 + $0x160] sm:$0xff]
    %v188 = vld [vmem:[#allocation5 + $0x168] sm:$0xff]
    %v189 = vld [vmem:[#allocation5 + $0x170] sm:$0xff]
    %v190 = vld [vmem:[#allocation5 + $0x178] sm:$0xff]
    %v191 = vld [vmem:[#allocation5 + $0x180] sm:$0xff]
    %v192 = vld [vmem:[#allocation5 + $0x188] sm:$0xff]
    %v193 = vld [vmem:[#allocation5 + $0x190] sm:$0xff]
    %v194 = vld [vmem:[#allocation5 + $0x198] sm:$0xff]
    %v195 = vld [vmem:[#allocation5 + $0x1a0] sm:$0xff]
    %v196 = vld [vmem:[#allocation5 + $0x1a8] sm:$0xff]
    %v197 = vld [vmem:[#allocation5 + $0x1b0] sm:$0xff]
    %v198 = vld [vmem:[#allocation5 + $0x1b8] sm:$0xff]
    %v199 = vld [vmem:[#allocation5 + $0x1c0] sm:$0xff]
    %v200 = vld [vmem:[#allocation5 + $0x1c8] sm:$0xff]
    %v201 = vld [vmem:[#allocation5 + $0x1d0] sm:$0xff]
    %v202 = vld [vmem:[#allocation5 + $0x1d8] sm:$0xff]
    %v203 = vld [vmem:[#allocation5 + $0x1e0] sm:$0xff]
    %v204 = vld [vmem:[#allocation5 + $0x1e8] sm:$0xff]
    %v205 = vld [vmem:[#allocation5 + $0x1f0] sm:$0xff]
    %v206 = vld [vmem:[#allocation5 + $0x1f8] sm:$0xff]
    %v207 = vld [vmem:[#allocation5 + $0x200] sm:$0xff]
    %v208 = vld [vmem:[#allocation5 + $0x208] sm:$0xff]
    %v209 = vld [vmem:[#allocation5 + $0x210] sm:$0xff]
    %v210 = vld [vmem:[#allocation5 + $0x218] sm:$0xff]
    %v211 = vld [vmem:[#allocation5 + $0x220] sm:$0xff]
    %v212 = vld [vmem:[#allocation5 + $0x228] sm:$0xff]
    %v213 = vld [vmem:[#allocation5 + $0x230] sm:$0xff]
    %v214 = vld [vmem:[#allocation5 + $0x238] sm:$0xff]
    %v215 = vld [vmem:[#allocation5 + $0x240] sm:$0xff]
    %v216 = vld [vmem:[#allocation5 + $0x248] sm:$0xff]
    %v217 = vld [vmem:[#allocation5 + $0x250] sm:$0xff]
    %v218 = vld [vmem:[#allocation5 + $0x258] sm:$0xff]
    %v219 = vld [vmem:[#allocation5 + $0x260] sm:$0xff]
    %v220 = vld [vmem:[#allocation5 + $0x268] sm:$0xff]
    %v221 = vld [vmem:[#allocation5 + $0x270] sm:$0xff]
    %v222 = vld [vmem:[#allocation5 + $0x278] sm:$0xff]
    %v223 = vld [vmem:[#allocation5 + $0x280] sm:$0xff]
    %v224 = vld [vmem:[#allocation5 + $0x288] sm:$0xff]
    %v225 = vld [vmem:[#allocation5 + $0x290] sm:$0xff]
    %v226 = vld [vmem:[#allocation5 + $0x298] sm:$0xff]
    %v227 = vld [vmem:[#allocation5 + $0x2a0] sm:$0xff]
    %v228 = vld [vmem:[#allocation5 + $0x2a8] sm:$0xff]
    %v229 = vld [vmem:[#allocation5 + $0x2b0] sm:$0xff]
    %v230 = vld [vmem:[#allocation5 + $0x2b8] sm:$0xff]
    %v231 = vld [vmem:[#allocation5 + $0x2c0] sm:$0xff]
    %v232 = vld [vmem:[#allocation5 + $0x2c8] sm:$0xff]
    %v233 = vld [vmem:[#allocation5 + $0x2d0] sm:$0xff]
    %v234 = vld [vmem:[#allocation5 + $0x2d8] sm:$0xff]
    %v235 = vld [vmem:[#allocation5 + $0x2e0] sm:$0xff]
    %v236 = vld [vmem:[#allocation5 + $0x2e8] sm:$0xff]
    %v237 = vld [vmem:[#allocation5 + $0x2f0] sm:$0xff]
    %v238 = vld [vmem:[#allocation5 + $0x2f8] sm:$0xff]
    %v239 = vld [vmem:[#allocation5 + $0x300] sm:$0xff]
    %v240 = vld [vmem:[#allocation5 + $0x308] sm:$0xff]
    %v241 = vld [vmem:[%s2] sm:$0x3]
    %v243 = vlaneseq
    %v244 = vshrl.u32 %v243, 7
    %v245 = vsub.s32 0, %v244
    %v246 = vrot.slane %v241, %v245
    %v247 = vlaneseq
    %v248 = vshrl.u32 %v247, 7
    %v249 = vsub.s32 1, %v248
    %v250 = vrot.slane %v241, %v249
    %v351 = vunpack.c.l.b16 %v143
    %v352 = vunpack.c.h.b16 %v143
    %v353 = vunpack.c.l.b16 %v144
    %v354 = vunpack.c.h.b16 %v144
    %v355 = vunpack.c.l.b16 %v145
    %v356 = vunpack.c.h.b16 %v145
    %v357 = vunpack.c.l.b16 %v146
    %v358 = vunpack.c.h.b16 %v146
    %v359 = vunpack.c.l.b16 %v147
    %v360 = vunpack.c.h.b16 %v147
    %v361 = vunpack.c.l.b16 %v148
    %v362 = vunpack.c.h.b16 %v148
    %v363 = vunpack.c.l.b16 %v149
    %v364 = vunpack.c.h.b16 %v149
    %v365 = vunpack.c.l.b16 %v150
    %v366 = vunpack.c.h.b16 %v150
    %v367 = vunpack.c.l.b16 %v151
    %v368 = vunpack.c.h.b16 %v151
    %v369 = vunpack.c.l.b16 %v152
    %v370 = vunpack.c.h.b16 %v152
    %v371 = vunpack.c.l.b16 %v153
    %v372 = vunpack.c.h.b16 %v153
    %v373 = vunpack.c.l.b16 %v154
    %v374 = vunpack.c.h.b16 %v154
    %v375 = vunpack.c.l.b16 %v155
    %v376 = vunpack.c.h.b16 %v155
    %v377 = vunpack.c.l.b16 %v156
    %v378 = vunpack.c.h.b16 %v156
    %v379 = vunpack.c.l.b16 %v157
    %v380 = vunpack.c.h.b16 %v157
    %v381 = vunpack.c.l.b16 %v158
    %v382 = vunpack.c.h.b16 %v158
    %v383 = vunpack.c.l.b16 %v159
    %v384 = vunpack.c.h.b16 %v159
    %v385 = vunpack.c.l.b16 %v160
    %v386 = vunpack.c.h.b16 %v160
    %v387 = vunpack.c.l.b16 %v161
    %v388 = vunpack.c.h.b16 %v161
    %v389 = vunpack.c.l.b16 %v162
    %v390 = vunpack.c.h.b16 %v162
    %v391 = vunpack.c.l.b16 %v163
    %v392 = vunpack.c.h.b16 %v163
    %v393 = vunpack.c.l.b16 %v164
    %v394 = vunpack.c.h.b16 %v164
    %v395 = vunpack.c.l.b16 %v165
    %v396 = vunpack.c.h.b16 %v165
    %v397 = vunpack.c.l.b16 %v166
    %v398 = vunpack.c.h.b16 %v166
    %v399 = vunpack.c.l.b16 %v167
    %v400 = vunpack.c.h.b16 %v167
    %v401 = vunpack.c.l.b16 %v168
    %v402 = vunpack.c.h.b16 %v168
    %v403 = vunpack.c.l.b16 %v169
    %v404 = vunpack.c.h.b16 %v169
    %v405 = vunpack.c.l.b16 %v170
    %v406 = vunpack.c.h.b16 %v170
    %v407 = vunpack.c.l.b16 %v171
    %v408 = vunpack.c.h.b16 %v171
    %v409 = vunpack.c.l.b16 %v172
    %v410 = vunpack.c.h.b16 %v172
    %v411 = vunpack.c.l.b16 %v173
    %v412 = vunpack.c.h.b16 %v173
    %v413 = vunpack.c.l.b16 %v174
    %v414 = vunpack.c.h.b16 %v174
    %v415 = vunpack.c.l.b16 %v175
    %v416 = vunpack.c.h.b16 %v175
    %v417 = vunpack.c.l.b16 %v176
    %v418 = vunpack.c.h.b16 %v176
    %v419 = vunpack.c.l.b16 %v177
    %v420 = vunpack.c.h.b16 %v177
    %v421 = vunpack.c.l.b16 %v178
    %v422 = vunpack.c.h.b16 %v178
    %v423 = vunpack.c.l.b16 %v179
    %v424 = vunpack.c.h.b16 %v179
    %v425 = vunpack.c.l.b16 %v180
    %v426 = vunpack.c.h.b16 %v180
    %v427 = vunpack.c.l.b16 %v181
    %v428 = vunpack.c.h.b16 %v181
    %v429 = vunpack.c.l.b16 %v182
    %v430 = vunpack.c.h.b16 %v182
    %v431 = vunpack.c.l.b16 %v183
    %v432 = vunpack.c.h.b16 %v183
    %v433 = vunpack.c.l.b16 %v184
    %v434 = vunpack.c.h.b16 %v184
    %v435 = vunpack.c.l.b16 %v185
    %v436 = vunpack.c.h.b16 %v185
    %v437 = vunpack.c.l.b16 %v186
    %v438 = vunpack.c.h.b16 %v186
    %v439 = vunpack.c.l.b16 %v187
    %v440 = vunpack.c.h.b16 %v187
    %v441 = vunpack.c.l.b16 %v188
    %v442 = vunpack.c.h.b16 %v188
    %v443 = vunpack.c.l.b16 %v189
    %v444 = vunpack.c.h.b16 %v189
    %v445 = vunpack.c.l.b16 %v190
    %v446 = vunpack.c.h.b16 %v190
    %v447 = vunpack.c.l.b16 %v191
    %v448 = vunpack.c.h.b16 %v191
    %v449 = vunpack.c.l.b16 %v192
    %v450 = vunpack.c.h.b16 %v192
    %v451 = vunpack.c.l.b16 %v193
    %v452 = vunpack.c.h.b16 %v193
    %v453 = vunpack.c.l.b16 %v194
    %v454 = vunpack.c.h.b16 %v194
    %v455 = vunpack.c.l.b16 %v195
    %v456 = vunpack.c.h.b16 %v195
    %v457 = vunpack.c.l.b16 %v196
    %v458 = vunpack.c.h.b16 %v196
    %v459 = vunpack.c.l.b16 %v197
    %v460 = vunpack.c.h.b16 %v197
    %v461 = vunpack.c.l.b16 %v198
    %v462 = vunpack.c.h.b16 %v198
    %v463 = vunpack.c.l.b16 %v199
    %v464 = vunpack.c.h.b16 %v199
    %v465 = vunpack.c.l.b16 %v200
    %v466 = vunpack.c.h.b16 %v200
    %v467 = vunpack.c.l.b16 %v201
    %v468 = vunpack.c.h.b16 %v201
    %v469 = vunpack.c.l.b16 %v202
    %v470 = vunpack.c.h.b16 %v202
    %v471 = vunpack.c.l.b16 %v203
    %v472 = vunpack.c.h.b16 %v203
    %v473 = vunpack.c.l.b16 %v204
    %v474 = vunpack.c.h.b16 %v204
    %v475 = vunpack.c.l.b16 %v205
    %v476 = vunpack.c.h.b16 %v205
    %v477 = vunpack.c.l.b16 %v206
    %v478 = vunpack.c.h.b16 %v206
    %v479 = vunpack.c.l.b16 %v207
    %v480 = vunpack.c.h.b16 %v207
    %v481 = vunpack.c.l.b16 %v208
    %v482 = vunpack.c.h.b16 %v208
    %v483 = vunpack.c.l.b16 %v209
    %v484 = vunpack.c.h.b16 %v209
    %v485 = vunpack.c.l.b16 %v210
    %v486 = vunpack.c.h.b16 %v210
    %v487 = vunpack.c.l.b16 %v211
    %v488 = vunpack.c.h.b16 %v211
    %v489 = vunpack.c.l.b16 %v212
    %v490 = vunpack.c.h.b16 %v212
    %v491 = vunpack.c.l.b16 %v213
    %v492 = vunpack.c.h.b16 %v213
    %v493 = vunpack.c.l.b16 %v214
    %v494 = vunpack.c.h.b16 %v214
    %v495 = vunpack.c.l.b16 %v215
    %v496 = vunpack.c.h.b16 %v215
    %v497 = vunpack.c.l.b16 %v216
    %v498 = vunpack.c.h.b16 %v216
    %v499 = vunpack.c.l.b16 %v217
    %v500 = vunpack.c.h.b16 %v217
    %v501 = vunpack.c.l.b16 %v218
    %v502 = vunpack.c.h.b16 %v218
    %v503 = vunpack.c.l.b16 %v219
    %v504 = vunpack.c.h.b16 %v219
    %v505 = vunpack.c.l.b16 %v220
    %v506 = vunpack.c.h.b16 %v220
    %v507 = vunpack.c.l.b16 %v221
    %v508 = vunpack.c.h.b16 %v221
    %v509 = vunpack.c.l.b16 %v222
    %v510 = vunpack.c.h.b16 %v222
    %v511 = vunpack.c.l.b16 %v223
    %v512 = vunpack.c.h.b16 %v223
    %v513 = vunpack.c.l.b16 %v224
    %v514 = vunpack.c.h.b16 %v224
    %v515 = vunpack.c.l.b16 %v225
    %v516 = vunpack.c.h.b16 %v225
    %v517 = vunpack.c.l.b16 %v226
    %v518 = vunpack.c.h.b16 %v226
    %v519 = vunpack.c.l.b16 %v227
    %v520 = vunpack.c.h.b16 %v227
    %v521 = vunpack.c.l.b16 %v228
    %v522 = vunpack.c.h.b16 %v228
    %v523 = vunpack.c.l.b16 %v229
    %v524 = vunpack.c.h.b16 %v229
    %v525 = vunpack.c.l.b16 %v230
    %v526 = vunpack.c.h.b16 %v230
    %v527 = vunpack.c.l.b16 %v231
    %v528 = vunpack.c.h.b16 %v231
    %v529 = vunpack.c.l.b16 %v232
    %v530 = vunpack.c.h.b16 %v232
    %v531 = vunpack.c.l.b16 %v233
    %v532 = vunpack.c.h.b16 %v233
    %v533 = vunpack.c.l.b16 %v234
    %v534 = vunpack.c.h.b16 %v234
    %v535 = vunpack.c.l.b16 %v235
    %v536 = vunpack.c.h.b16 %v235
    %v537 = vunpack.c.l.b16 %v236
    %v538 = vunpack.c.h.b16 %v236
    %v539 = vunpack.c.l.b16 %v237
    %v540 = vunpack.c.h.b16 %v237
    %v541 = vunpack.c.l.b16 %v238
    %v542 = vunpack.c.h.b16 %v238
    %v543 = vunpack.c.l.b16 %v239
    %v544 = vunpack.c.h.b16 %v239
    %v545 = vunpack.c.l.b16 %v240
    %v546 = vunpack.c.h.b16 %v240
    %v547 = vpack.c.b16 %v353, %v351
    %v548 = vpack.c.b16 %v354, %v352
    %v549 = vpack.c.b16 %v357, %v355
    %v550 = vpack.c.b16 %v358, %v356
    %v551 = vpack.c.b16 %v361, %v359
    %v552 = vpack.c.b16 %v362, %v360
    %v553 = vpack.c.b16 %v365, %v363
    %v554 = vpack.c.b16 %v366, %v364
    %v555 = vpack.c.b16 %v369, %v367
    %v556 = vpack.c.b16 %v370, %v368
    %v557 = vpack.c.b16 %v373, %v371
    %v558 = vpack.c.b16 %v374, %v372
    %v559 = vpack.c.b16 %v377, %v375
    %v560 = vpack.c.b16 %v378, %v376
    %v561 = vpack.c.b16 %v381, %v379
    %v562 = vpack.c.b16 %v382, %v380
    %v563 = vpack.c.b16 %v385, %v383
    %v564 = vpack.c.b16 %v386, %v384
    %v565 = vpack.c.b16 %v389, %v387
    %v566 = vpack.c.b16 %v390, %v388
    %v567 = vpack.c.b16 %v393, %v391
    %v568 = vpack.c.b16 %v394, %v392
    %v569 = vpack.c.b16 %v397, %v395
    %v570 = vpack.c.b16 %v398, %v396
    %v571 = vpack.c.b16 %v401, %v399
    %v572 = vpack.c.b16 %v402, %v400
    %v573 = vpack.c.b16 %v405, %v403
    %v574 = vpack.c.b16 %v406, %v404
    %v575 = vpack.c.b16 %v409, %v407
    %v576 = vpack.c.b16 %v410, %v408
    %v577 = vpack.c.b16 %v413, %v411
    %v578 = vpack.c.b16 %v414, %v412
    %v579 = vpack.c.b16 %v417, %v415
    %v580 = vpack.c.b16 %v418, %v416
    %v581 = vpack.c.b16 %v421, %v419
    %v582 = vpack.c.b16 %v422, %v420
    %v583 = vpack.c.b16 %v425, %v423
    %v584 = vpack.c.b16 %v426, %v424
    %v585 = vpack.c.b16 %v429, %v427
    %v586 = vpack.c.b16 %v430, %v428
    %v587 = vpack.c.b16 %v433, %v431
    %v588 = vpack.c.b16 %v434, %v432
    %v589 = vpack.c.b16 %v437, %v435
    %v590 = vpack.c.b16 %v438, %v436
    %v591 = vpack.c.b16 %v441, %v439
    %v592 = vpack.c.b16 %v442, %v440
    %v593 = vpack.c.b16 %v445, %v443
    %v594 = vpack.c.b16 %v446, %v444
    %v595 = vpack.c.b16 %v449, %v447
    %v596 = vpack.c.b16 %v450, %v448
    %v597 = vpack.c.b16 %v453, %v451
    %v598 = vpack.c.b16 %v454, %v452
    %v599 = vpack.c.b16 %v457, %v455
    %v600 = vpack.c.b16 %v458, %v456
    %v601 = vpack.c.b16 %v461, %v459
    %v602 = vpack.c.b16 %v462, %v460
    %v603 = vpack.c.b16 %v465, %v463
    %v604 = vpack.c.b16 %v466, %v464
    %v605 = vpack.c.b16 %v469, %v467
    %v606 = vpack.c.b16 %v470, %v468
    %v607 = vpack.c.b16 %v473, %v471
    %v608 = vpack.c.b16 %v474, %v472
    %v609 = vpack.c.b16 %v477, %v475
    %v610 = vpack.c.b16 %v478, %v476
    %v611 = vpack.c.b16 %v481, %v479
    %v612 = vpack.c.b16 %v482, %v480
    %v613 = vpack.c.b16 %v485, %v483
    %v614 = vpack.c.b16 %v486, %v484
    %v615 = vpack.c.b16 %v489, %v487
    %v616 = vpack.c.b16 %v490, %v488
    %v617 = vpack.c.b16 %v493, %v491
    %v618 = vpack.c.b16 %v494, %v492
    %v619 = vpack.c.b16 %v497, %v495
    %v620 = vpack.c.b16 %v498, %v496
    %v621 = vpack.c.b16 %v501, %v499
    %v622 = vpack.c.b16 %v502, %v500
    %v623 = vpack.c.b16 %v505, %v503
    %v624 = vpack.c.b16 %v506, %v504
    %v625 = vpack.c.b16 %v509, %v507
    %v626 = vpack.c.b16 %v510, %v508
    %v627 = vpack.c.b16 %v513, %v511
    %v628 = vpack.c.b16 %v514, %v512
    %v629 = vpack.c.b16 %v517, %v515
    %v630 = vpack.c.b16 %v518, %v516
    %v631 = vpack.c.b16 %v521, %v519
    %v632 = vpack.c.b16 %v522, %v520
    %v633 = vpack.c.b16 %v525, %v523
    %v634 = vpack.c.b16 %v526, %v524
    %v635 = vpack.c.b16 %v529, %v527
    %v636 = vpack.c.b16 %v530, %v528
    %v637 = vpack.c.b16 %v533, %v531
    %v638 = vpack.c.b16 %v534, %v532
    %v639 = vpack.c.b16 %v537, %v535
    %v640 = vpack.c.b16 %v538, %v536
    %v641 = vpack.c.b16 %v541, %v539
    %v642 = vpack.c.b16 %v542, %v540
    %v643 = vpack.c.b16 %v545, %v543
    %v644 = vpack.c.b16 %v546, %v544
    %vm743 = vcmask 130048
    %v745 = vsel %vm743, %v142, 0
    %747 = vmatprep.subr.bf16.mxu0 %v562
    %748 = vmatpush1.bf16.msra.mxu0 %v561
    %749 = vmatprep.subr.bf16.mxu0 %v560
    %750 = vmatpush1.bf16.msra.mxu0 %v559
    %751 = vmatprep.subr.bf16.mxu0 %v558
    %752 = vmatpush1.bf16.msra.mxu0 %v557
    %753 = vmatprep.subr.bf16.mxu0 %v556
    %754 = vmatpush1.bf16.msra.mxu0 %v555
    %755 = vmatprep.subr.bf16.mxu0 %v554
    %756 = vmatpush1.bf16.msra.mxu0 %v553
    %757 = vmatprep.subr.bf16.mxu0 %v552
    %758 = vmatpush1.bf16.msra.mxu0 %v551
    %759 = vmatprep.subr.bf16.mxu0 %v550
    %760 = vmatpush1.bf16.msra.mxu0 %v549
    %761 = vmatprep.subr.bf16.mxu0 %v548
    %762 = vmatpush1.bf16.msra.mxu0 %v547
    %763 = vmatprep.subr.bf16.mxu0 %v578
    %764 = vmatpush2.bf16.msra.mxu0 %v577
    %765 = vmatprep.subr.bf16.mxu0 %v576
    %766 = vmatpush2.bf16.msra.mxu0 %v575
    %767 = vmatprep.subr.bf16.mxu0 %v574
    %768 = vmatpush2.bf16.msra.mxu0 %v573
    %769 = vmatprep.subr.bf16.mxu0 %v572
    %770 = vmatpush2.bf16.msra.mxu0 %v571
    %771 = vmatprep.subr.bf16.mxu0 %v570
    %772 = vmatpush2.bf16.msra.mxu0 %v569
    %773 = vmatprep.subr.bf16.mxu0 %v568
    %774 = vmatpush2.bf16.msra.mxu0 %v567
    %775 = vmatprep.subr.bf16.mxu0 %v566
    %776 = vmatpush2.bf16.msra.mxu0 %v565
    %777 = vmatprep.subr.bf16.mxu0 %v564
    %778 = vmatpush2.bf16.msra.mxu0 %v563
    %779 = vmatprep.mubr.bf16.mxu0 %v137
    %780 = vmatmul.mubr.bf16.gmra.mxu0 %v136
    %v781 = vpop.f32.mrf.mxu0
    %v782 = vadd.f32 %v246, %v781
    %v783 = vpop.f32.mrf.mxu0
    %v784 = vadd.f32 %v250, %v783
    %v785 = vpop.f32.mrf.mxu0
    %v786 = vadd.f32 %v246, %v785
    %v787 = vpop.f32.mrf.mxu0
    %v788 = vadd.f32 %v250, %v787
    %789 = vdwg.mxu0
    %790 = vmatprep.subr.bf16.mxu0 %v594
    %791 = vmatpush1.bf16.msra.mxu0 %v593
    %792 = vmatprep.subr.bf16.mxu0 %v592
    %793 = vmatpush1.bf16.msra.mxu0 %v591
    %794 = vmatprep.subr.bf16.mxu0 %v590
    %795 = vmatpush1.bf16.msra.mxu0 %v589
    %796 = vmatprep.subr.bf16.mxu0 %v588
    %797 = vmatpush1.bf16.msra.mxu0 %v587
    %798 = vmatprep.subr.bf16.mxu0 %v586
    %799 = vmatpush1.bf16.msra.mxu0 %v585
    %800 = vmatprep.subr.bf16.mxu0 %v584
    %801 = vmatpush1.bf16.msra.mxu0 %v583
    %802 = vmatprep.subr.bf16.mxu0 %v582
    %803 = vmatpush1.bf16.msra.mxu0 %v581
    %804 = vmatprep.subr.bf16.mxu0 %v580
    %805 = vmatpush1.bf16.msra.mxu0 %v579
    %806 = vmatprep.subr.bf16.mxu0 %v610
    %807 = vmatpush2.bf16.msra.mxu0 %v609
    %808 = vmatprep.subr.bf16.mxu0 %v608
    %809 = vmatpush2.bf16.msra.mxu0 %v607
    %810 = vmatprep.subr.bf16.mxu0 %v606
    %811 = vmatpush2.bf16.msra.mxu0 %v605
    %812 = vmatprep.subr.bf16.mxu0 %v604
    %813 = vmatpush2.bf16.msra.mxu0 %v603
    %814 = vmatprep.subr.bf16.mxu0 %v602
    %815 = vmatpush2.bf16.msra.mxu0 %v601
    %816 = vmatprep.subr.bf16.mxu0 %v600
    %817 = vmatpush2.bf16.msra.mxu0 %v599
    %818 = vmatprep.subr.bf16.mxu0 %v598
    %819 = vmatpush2.bf16.msra.mxu0 %v597
    %820 = vmatprep.subr.bf16.mxu0 %v596
    %821 = vmatpush2.bf16.msra.mxu0 %v595
    %822 = vmatprep.mubr.bf16.mxu0 %v139
    %823 = vmatmul.mubr.bf16.gmra.mxu0 %v138
    %v824 = vpop.f32.mrf.mxu0
    %v825 = vadd.f32 %v782, %v824
    %v826 = vpop.f32.mrf.mxu0
    %v827 = vadd.f32 %v784, %v826
    %v828 = vpop.f32.mrf.mxu0
    %v829 = vadd.f32 %v786, %v828
    %v830 = vpop.f32.mrf.mxu0
    %v831 = vadd.f32 %v788, %v830
    %832 = vdwg.mxu0
    %833 = vmatprep.subr.bf16.mxu0 %v626
    %834 = vmatpush1.bf16.msra.mxu0 %v625
    %835 = vmatprep.subr.bf16.mxu0 %v624
    %836 = vmatpush1.bf16.msra.mxu0 %v623
    %837 = vmatprep.subr.bf16.mxu0 %v622
    %838 = vmatpush1.bf16.msra.mxu0 %v621
    %839 = vmatprep.subr.bf16.mxu0 %v620
    %840 = vmatpush1.bf16.msra.mxu0 %v619
    %841 = vmatprep.subr.bf16.mxu0 %v618
    %842 = vmatpush1.bf16.msra.mxu0 %v617
    %843 = vmatprep.subr.bf16.mxu0 %v616
    %844 = vmatpush1.bf16.msra.mxu0 %v615
    %845 = vmatprep.subr.bf16.mxu0 %v614
    %846 = vmatpush1.bf16.msra.mxu0 %v613
    %847 = vmatprep.subr.bf16.mxu0 %v612
    %848 = vmatpush1.bf16.msra.mxu0 %v611
    %849 = vmatprep.subr.bf16.mxu0 %v642
    %850 = vmatpush2.bf16.msra.mxu0 %v641
    %851 = vmatprep.subr.bf16.mxu0 %v640
    %852 = vmatpush2.bf16.msra.mxu0 %v639
    %853 = vmatprep.subr.bf16.mxu0 %v638
    %854 = vmatpush2.bf16.msra.mxu0 %v637
    %855 = vmatprep.subr.bf16.mxu0 %v636
    %856 = vmatpush2.bf16.msra.mxu0 %v635
    %857 = vmatprep.subr.bf16.mxu0 %v634
    %858 = vmatpush2.bf16.msra.mxu0 %v633
    %859 = vmatprep.subr.bf16.mxu0 %v632
    %860 = vmatpush2.bf16.msra.mxu0 %v631
    %861 = vmatprep.subr.bf16.mxu0 %v630
    %862 = vmatpush2.bf16.msra.mxu0 %v629
    %863 = vmatprep.subr.bf16.mxu0 %v628
    %864 = vmatpush2.bf16.msra.mxu0 %v627
    %865 = vmatprep.mubr.bf16.mxu0 %v141
    %866 = vmatmul.mubr.bf16.gmra.mxu0 %v140
    %v867 = vpop.f32.mrf.mxu0
    %v868 = vadd.f32 %v825, %v867
    %v869 = vpop.f32.mrf.mxu0
    %v870 = vadd.f32 %v827, %v869
    %v871 = vpop.f32.mrf.mxu0
    %v872 = vadd.f32 %v829, %v871
    %v873 = vpop.f32.mrf.mxu0
    %v874 = vadd.f32 %v831, %v873
    %875 = vdwg.mxu0
    %876 = vmatprep.subr.bf16.mxu0 0
    %877 = vmatpush1.bf16.msra.mxu0 0
    %878 = vmatprep.subr.bf16.mxu0 0
    %879 = vmatpush1.bf16.msra.mxu0 0
    %880 = vmatprep.subr.bf16.mxu0 0
    %881 = vmatpush1.bf16.msra.mxu0 0
    %882 = vmatprep.subr.bf16.mxu0 0
    %883 = vmatpush1.bf16.msra.mxu0 0
    %884 = vmatprep.subr.bf16.mxu0 0
    %885 = vmatpush1.bf16.msra.mxu0 0
    %886 = vmatprep.subr.bf16.mxu0 0
    %887 = vmatpush1.bf16.msra.mxu0 0
    %888 = vmatprep.subr.bf16.mxu0 0
    %889 = vmatpush1.bf16.msra.mxu0 0
    %890 = vmatprep.subr.bf16.mxu0 %v644
    %891 = vmatpush1.bf16.msra.mxu0 %v643
    %892 = vmatprep.subr.bf16.mxu0 0
    %893 = vmatpush2.bf16.msra.mxu0 0
    %894 = vmatprep.subr.bf16.mxu0 0
    %895 = vmatpush2.bf16.msra.mxu0 0
    %896 = vmatprep.subr.bf16.mxu0 0
    %897 = vmatpush2.bf16.msra.mxu0 0
    %898 = vmatprep.subr.bf16.mxu0 0
    %899 = vmatpush2.bf16.msra.mxu0 0
    %900 = vmatprep.subr.bf16.mxu0 0
    %901 = vmatpush2.bf16.msra.mxu0 0
    %902 = vmatprep.subr.bf16.mxu0 0
    %903 = vmatpush2.bf16.msra.mxu0 0
    %904 = vmatprep.subr.bf16.mxu0 0
    %905 = vmatpush2.bf16.msra.mxu0 0
    %906 = vmatprep.subr.bf16.mxu0 0
    %907 = vmatpush2.bf16.msra.mxu0 0
    %908 = vmatprep.mubr.bf16.mxu0 0
    %909 = vmatmul.mubr.bf16.gmra.mxu0 %v745
    %v910 = vpop.f32.mrf.mxu0
    %v911 = vadd.f32 %v868, %v910
    %v912 = vpop.f32.mrf.mxu0
    %v913 = vadd.f32 %v870, %v912
    %v914 = vpop.f32.mrf.mxu0
    %v915 = vadd.f32 %v872, %v914
    %v916 = vpop.f32.mrf.mxu0
    %v917 = vadd.f32 %v874, %v916
    %918 = vdwg.mxu0
    %v919 = vmax.f32 %v911, 0.0
    %v920 = vmax.f32 %v913, 0.0
    %v921 = vmax.f32 %v915, 0.0
    %v922 = vmax.f32 %v917, 0.0
    %v923 = vpack.c.bf16 %v921, %v919
    %v924 = vpack.c.bf16 %v922, %v920
    %v925 = vld [vmem:[#allocation7] sm:$0xff]
    %v926 = vld [vmem:[#allocation7 + $0x8] sm:$0xff]
    %v927 = vld [vmem:[#allocation7 + $0x10] sm:$0xff]
    %v928 = vld [vmem:[#allocation7 + $0x18] sm:$0xff]
    %v929 = vld [vmem:[#allocation7 + $0x20] sm:$0xff]
    %v930 = vld [vmem:[#allocation7 + $0x28] sm:$0xff]
    %v931 = vld [vmem:[#allocation7 + $0x30] sm:$0xff]
    %v932 = vld [vmem:[#allocation7 + $0x38] sm:$0xff]
    %v933 = vld [vmem:[#allocation7 + $0x40] sm:$0xff]
    %v934 = vld [vmem:[#allocation7 + $0x48] sm:$0xff]
    %v935 = vld [vmem:[#allocation7 + $0x50] sm:$0xff]
    %v936 = vld [vmem:[#allocation7 + $0x58] sm:$0xff]
    %v937 = vld [vmem:[#allocation7 + $0x60] sm:$0xff]
    %v938 = vld [vmem:[#allocation7 + $0x68] sm:$0xff]
    %v939 = vld [vmem:[#allocation7 + $0x70] sm:$0xff]
    %v940 = vld [vmem:[#allocation7 + $0x78] sm:$0xff]
    %v941 = vld [vmem:[#allocation7 + $0x80] sm:$0xff]
    %v942 = vld [vmem:[#allocation7 + $0x88] sm:$0xff]
    %v943 = vld [vmem:[#allocation7 + $0x90] sm:$0xff]
    %v944 = vld [vmem:[#allocation7 + $0x98] sm:$0xff]
    %v945 = vld [vmem:[#allocation7 + $0xa0] sm:$0xff]
    %v946 = vld [vmem:[#allocation7 + $0xa8] sm:$0xff]
    %v947 = vld [vmem:[#allocation7 + $0xb0] sm:$0xff]
    %v948 = vld [vmem:[#allocation7 + $0xb8] sm:$0xff]
    %v949 = vld [vmem:[#allocation7 + $0xc0] sm:$0xff]
    %v950 = vld [vmem:[#allocation7 + $0xc8] sm:$0xff]
    %v951 = vld [vmem:[#allocation7 + $0xd0] sm:$0xff]
    %v952 = vld [vmem:[#allocation7 + $0xd8] sm:$0xff]
    %v953 = vld [vmem:[#allocation7 + $0xe0] sm:$0xff]
    %v954 = vld [vmem:[#allocation7 + $0xe8] sm:$0xff]
    %v955 = vld [vmem:[#allocation7 + $0xf0] sm:$0xff]
    %v956 = vld [vmem:[#allocation7 + $0xf8] sm:$0xff]
    %v957 = vld [vmem:[%s4] sm:$0x3]
    %v959 = vlaneseq
    %v960 = vshrl.u32 %v959, 7
    %v961 = vsub.s32 0, %v960
    %v962 = vrot.slane %v957, %v961
    %v963 = vlaneseq
    %v964 = vshrl.u32 %v963, 7
    %v965 = vsub.s32 1, %v964
    %v966 = vrot.slane %v957, %v965
    %v1001 = vunpack.c.l.b16 %v925
    %v1002 = vunpack.c.h.b16 %v925
    %v1003 = vunpack.c.l.b16 %v926
    %v1004 = vunpack.c.h.b16 %v926
    %v1005 = vunpack.c.l.b16 %v927
    %v1006 = vunpack.c.h.b16 %v927
    %v1007 = vunpack.c.l.b16 %v928
    %v1008 = vunpack.c.h.b16 %v928
    %v1009 = vunpack.c.l.b16 %v929
    %v1010 = vunpack.c.h.b16 %v929
    %v1011 = vunpack.c.l.b16 %v930
    %v1012 = vunpack.c.h.b16 %v930
    %v1013 = vunpack.c.l.b16 %v931
    %v1014 = vunpack.c.h.b16 %v931
    %v1015 = vunpack.c.l.b16 %v932
    %v1016 = vunpack.c.h.b16 %v932
    %v1017 = vunpack.c.l.b16 %v933
    %v1018 = vunpack.c.h.b16 %v933
    %v1019 = vunpack.c.l.b16 %v934
    %v1020 = vunpack.c.h.b16 %v934
    %v1021 = vunpack.c.l.b16 %v935
    %v1022 = vunpack.c.h.b16 %v935
    %v1023 = vunpack.c.l.b16 %v936
    %v1024 = vunpack.c.h.b16 %v936
    %v1025 = vunpack.c.l.b16 %v937
    %v1026 = vunpack.c.h.b16 %v937
    %v1027 = vunpack.c.l.b16 %v938
    %v1028 = vunpack.c.h.b16 %v938
    %v1029 = vunpack.c.l.b16 %v939
    %v1030 = vunpack.c.h.b16 %v939
    %v1031 = vunpack.c.l.b16 %v940
    %v1032 = vunpack.c.h.b16 %v940
    %v1033 = vunpack.c.l.b16 %v941
    %v1034 = vunpack.c.h.b16 %v941
    %v1035 = vunpack.c.l.b16 %v942
    %v1036 = vunpack.c.h.b16 %v942
    %v1037 = vunpack.c.l.b16 %v943
    %v1038 = vunpack.c.h.b16 %v943
    %v1039 = vunpack.c.l.b16 %v944
    %v1040 = vunpack.c.h.b16 %v944
    %v1041 = vunpack.c.l.b16 %v945
    %v1042 = vunpack.c.h.b16 %v945
    %v1043 = vunpack.c.l.b16 %v946
    %v1044 = vunpack.c.h.b16 %v946
    %v1045 = vunpack.c.l.b16 %v947
    %v1046 = vunpack.c.h.b16 %v947
    %v1047 = vunpack.c.l.b16 %v948
    %v1048 = vunpack.c.h.b16 %v948
    %v1049 = vunpack.c.l.b16 %v949
    %v1050 = vunpack.c.h.b16 %v949
    %v1051 = vunpack.c.l.b16 %v950
    %v1052 = vunpack.c.h.b16 %v950
    %v1053 = vunpack.c.l.b16 %v951
    %v1054 = vunpack.c.h.b16 %v951
    %v1055 = vunpack.c.l.b16 %v952
    %v1056 = vunpack.c.h.b16 %v952
    %v1057 = vunpack.c.l.b16 %v953
    %v1058 = vunpack.c.h.b16 %v953
    %v1059 = vunpack.c.l.b16 %v954
    %v1060 = vunpack.c.h.b16 %v954
    %v1061 = vunpack.c.l.b16 %v955
    %v1062 = vunpack.c.h.b16 %v955
    %v1063 = vunpack.c.l.b16 %v956
    %v1064 = vunpack.c.h.b16 %v956
    %v1065 = vpack.c.b16 %v1003, %v1001
    %v1066 = vpack.c.b16 %v1004, %v1002
    %v1067 = vpack.c.b16 %v1007, %v1005
    %v1068 = vpack.c.b16 %v1008, %v1006
    %v1069 = vpack.c.b16 %v1011, %v1009
    %v1070 = vpack.c.b16 %v1012, %v1010
    %v1071 = vpack.c.b16 %v1015, %v1013
    %v1072 = vpack.c.b16 %v1016, %v1014
    %v1073 = vpack.c.b16 %v1019, %v1017
    %v1074 = vpack.c.b16 %v1020, %v1018
    %v1075 = vpack.c.b16 %v1023, %v1021
    %v1076 = vpack.c.b16 %v1024, %v1022
    %v1077 = vpack.c.b16 %v1027, %v1025
    %v1078 = vpack.c.b16 %v1028, %v1026
    %v1079 = vpack.c.b16 %v1031, %v1029
    %v1080 = vpack.c.b16 %v1032, %v1030
    %v1081 = vpack.c.b16 %v1035, %v1033
    %v1082 = vpack.c.b16 %v1036, %v1034
    %v1083 = vpack.c.b16 %v1039, %v1037
    %v1084 = vpack.c.b16 %v1040, %v1038
    %v1085 = vpack.c.b16 %v1043, %v1041
    %v1086 = vpack.c.b16 %v1044, %v1042
    %v1087 = vpack.c.b16 %v1047, %v1045
    %v1088 = vpack.c.b16 %v1048, %v1046
    %v1089 = vpack.c.b16 %v1051, %v1049
    %v1090 = vpack.c.b16 %v1052, %v1050
    %v1091 = vpack.c.b16 %v1055, %v1053
    %v1092 = vpack.c.b16 %v1056, %v1054
    %v1093 = vpack.c.b16 %v1059, %v1057
    %v1094 = vpack.c.b16 %v1060, %v1058
    %v1095 = vpack.c.b16 %v1063, %v1061
    %v1096 = vpack.c.b16 %v1064, %v1062
    %1129 = vmatprep.subr.bf16.mxu0 %v1080
    %1130 = vmatpush1.bf16.msra.mxu0 %v1079
    %1131 = vmatprep.subr.bf16.mxu0 %v1078
    %1132 = vmatpush1.bf16.msra.mxu0 %v1077
    %1133 = vmatprep.subr.bf16.mxu0 %v1076
    %1134 = vmatpush1.bf16.msra.mxu0 %v1075
    %1135 = vmatprep.subr.bf16.mxu0 %v1074
    %1136 = vmatpush1.bf16.msra.mxu0 %v1073
    %1137 = vmatprep.subr.bf16.mxu0 %v1072
    %1138 = vmatpush1.bf16.msra.mxu0 %v1071
    %1139 = vmatprep.subr.bf16.mxu0 %v1070
    %1140 = vmatpush1.bf16.msra.mxu0 %v1069
    %1141 = vmatprep.subr.bf16.mxu0 %v1068
    %1142 = vmatpush1.bf16.msra.mxu0 %v1067
    %1143 = vmatprep.subr.bf16.mxu0 %v1066
    %1144 = vmatpush1.bf16.msra.mxu0 %v1065
    %1145 = vmatprep.subr.bf16.mxu0 %v1096
    %1146 = vmatpush2.bf16.msra.mxu0 %v1095
    %1147 = vmatprep.subr.bf16.mxu0 %v1094
    %1148 = vmatpush2.bf16.msra.mxu0 %v1093
    %1149 = vmatprep.subr.bf16.mxu0 %v1092
    %1150 = vmatpush2.bf16.msra.mxu0 %v1091
    %1151 = vmatprep.subr.bf16.mxu0 %v1090
    %1152 = vmatpush2.bf16.msra.mxu0 %v1089
    %1153 = vmatprep.subr.bf16.mxu0 %v1088
    %1154 = vmatpush2.bf16.msra.mxu0 %v1087
    %1155 = vmatprep.subr.bf16.mxu0 %v1086
    %1156 = vmatpush2.bf16.msra.mxu0 %v1085
    %1157 = vmatprep.subr.bf16.mxu0 %v1084
    %1158 = vmatpush2.bf16.msra.mxu0 %v1083
    %1159 = vmatprep.subr.bf16.mxu0 %v1082
    %1160 = vmatpush2.bf16.msra.mxu0 %v1081
    %1161 = vmatprep.mubr.bf16.mxu0 %v924
    %1162 = vmatmul.mubr.bf16.gmra.mxu0 %v923
    %v1163 = vpop.f32.mrf.mxu0
    %v1164 = vadd.f32 %v962, %v1163
    %v1165 = vpop.f32.mrf.mxu0
    %v1166 = vadd.f32 %v966, %v1165
    %v1167 = vpop.f32.mrf.mxu0
    %v1168 = vadd.f32 %v962, %v1167
    %v1169 = vpop.f32.mrf.mxu0
    %v1170 = vadd.f32 %v966, %v1169
    %1171 = vdwg.mxu0
    %v1172 = vmax.f32 %v1164, 0.0
    %v1173 = vmax.f32 %v1166, 0.0
    %v1174 = vmax.f32 %v1168, 0.0
    %v1175 = vmax.f32 %v1170, 0.0
    %v1176 = vpack.c.bf16 %v1174, %v1172
    %v1177 = vpack.c.bf16 %v1175, %v1173
    %v1178 = vld [vmem:[#allocation8] sm:$0xff]
    %v1179 = vld [vmem:[#allocation8 + $0x8] sm:$0xff]
    %v1180 = vld [vmem:[#allocation8 + $0x10] sm:$0xff]
    %v1181 = vld [vmem:[#allocation8 + $0x18] sm:$0xff]
    %v1182 = vld [vmem:[#allocation8 + $0x20] sm:$0xff]
    %v1183 = vld [vmem:[#allocation8 + $0x28] sm:$0xff]
    %v1184 = vld [vmem:[#allocation8 + $0x30] sm:$0xff]
    %v1185 = vld [vmem:[#allocation8 + $0x38] sm:$0xff]
    %v1186 = vld [vmem:[#allocation8 + $0x40] sm:$0xff]
    %v1187 = vld [vmem:[#allocation8 + $0x48] sm:$0xff]
    %v1188 = vld [vmem:[#allocation8 + $0x50] sm:$0xff]
    %v1189 = vld [vmem:[#allocation8 + $0x58] sm:$0xff]
    %v1190 = vld [vmem:[#allocation8 + $0x60] sm:$0xff]
    %v1191 = vld [vmem:[#allocation8 + $0x68] sm:$0xff]
    %v1192 = vld [vmem:[#allocation8 + $0x70] sm:$0xff]
    %v1193 = vld [vmem:[#allocation8 + $0x78] sm:$0xff]
    %v1194 = vld [vmem:[#allocation8 + $0x80] sm:$0xff]
    %v1195 = vld [vmem:[#allocation8 + $0x88] sm:$0xff]
    %v1196 = vld [vmem:[#allocation8 + $0x90] sm:$0xff]
    %v1197 = vld [vmem:[#allocation8 + $0x98] sm:$0xff]
    %v1198 = vld [vmem:[#allocation8 + $0xa0] sm:$0xff]
    %v1199 = vld [vmem:[#allocation8 + $0xa8] sm:$0xff]
    %v1200 = vld [vmem:[#allocation8 + $0xb0] sm:$0xff]
    %v1201 = vld [vmem:[#allocation8 + $0xb8] sm:$0xff]
    %v1202 = vld [vmem:[#allocation8 + $0xc0] sm:$0xff]
    %v1203 = vld [vmem:[#allocation8 + $0xc8] sm:$0xff]
    %v1204 = vld [vmem:[#allocation8 + $0xd0] sm:$0xff]
    %v1205 = vld [vmem:[#allocation8 + $0xd8] sm:$0xff]
    %v1206 = vld [vmem:[#allocation8 + $0xe0] sm:$0xff]
    %v1207 = vld [vmem:[#allocation8 + $0xe8] sm:$0xff]
    %v1208 = vld [vmem:[#allocation8 + $0xf0] sm:$0xff]
    %v1209 = vld [vmem:[#allocation8 + $0xf8] sm:$0xff]
    %v1210 = vld [vmem:[%s6] sm:$0x3]
    %v1212 = vlaneseq
    %v1213 = vshrl.u32 %v1212, 7
    %v1214 = vsub.s32 0, %v1213
    %v1215 = vrot.slane %v1210, %v1214
    %v1216 = vlaneseq
    %v1217 = vshrl.u32 %v1216, 7
    %v1218 = vsub.s32 1, %v1217
    %v1219 = vrot.slane %v1210, %v1218
    %v1254 = vunpack.c.l.b16 %v1178
    %v1255 = vunpack.c.h.b16 %v1178
    %v1256 = vunpack.c.l.b16 %v1179
    %v1257 = vunpack.c.h.b16 %v1179
    %v1258 = vunpack.c.l.b16 %v1180
    %v1259 = vunpack.c.h.b16 %v1180
    %v1260 = vunpack.c.l.b16 %v1181
    %v1261 = vunpack.c.h.b16 %v1181
    %v1262 = vunpack.c.l.b16 %v1182
    %v1263 = vunpack.c.h.b16 %v1182
    %v1264 = vunpack.c.l.b16 %v1183
    %v1265 = vunpack.c.h.b16 %v1183
    %v1266 = vunpack.c.l.b16 %v1184
    %v1267 = vunpack.c.h.b16 %v1184
    %v1268 = vunpack.c.l.b16 %v1185
    %v1269 = vunpack.c.h.b16 %v1185
    %v1270 = vunpack.c.l.b16 %v1186
    %v1271 = vunpack.c.h.b16 %v1186
    %v1272 = vunpack.c.l.b16 %v1187
    %v1273 = vunpack.c.h.b16 %v1187
    %v1274 = vunpack.c.l.b16 %v1188
    %v1275 = vunpack.c.h.b16 %v1188
    %v1276 = vunpack.c.l.b16 %v1189
    %v1277 = vunpack.c.h.b16 %v1189
    %v1278 = vunpack.c.l.b16 %v1190
    %v1279 = vunpack.c.h.b16 %v1190
    %v1280 = vunpack.c.l.b16 %v1191
    %v1281 = vunpack.c.h.b16 %v1191
    %v1282 = vunpack.c.l.b16 %v1192
    %v1283 = vunpack.c.h.b16 %v1192
    %v1284 = vunpack.c.l.b16 %v1193
    %v1285 = vunpack.c.h.b16 %v1193
    %v1286 = vunpack.c.l.b16 %v1194
    %v1287 = vunpack.c.h.b16 %v1194
    %v1288 = vunpack.c.l.b16 %v1195
    %v1289 = vunpack.c.h.b16 %v1195
    %v1290 = vunpack.c.l.b16 %v1196
    %v1291 = vunpack.c.h.b16 %v1196
    %v1292 = vunpack.c.l.b16 %v1197
    %v1293 = vunpack.c.h.b16 %v1197
    %v1294 = vunpack.c.l.b16 %v1198
    %v1295 = vunpack.c.h.b16 %v1198
    %v1296 = vunpack.c.l.b16 %v1199
    %v1297 = vunpack.c.h.b16 %v1199
    %v1298 = vunpack.c.l.b16 %v1200
    %v1299 = vunpack.c.h.b16 %v1200
    %v1300 = vunpack.c.l.b16 %v1201
    %v1301 = vunpack.c.h.b16 %v1201
    %v1302 = vunpack.c.l.b16 %v1202
    %v1303 = vunpack.c.h.b16 %v1202
    %v1304 = vunpack.c.l.b16 %v1203
    %v1305 = vunpack.c.h.b16 %v1203
    %v1306 = vunpack.c.l.b16 %v1204
    %v1307 = vunpack.c.h.b16 %v1204
    %v1308 = vunpack.c.l.b16 %v1205
    %v1309 = vunpack.c.h.b16 %v1205
    %v1310 = vunpack.c.l.b16 %v1206
    %v1311 = vunpack.c.h.b16 %v1206
    %v1312 = vunpack.c.l.b16 %v1207
    %v1313 = vunpack.c.h.b16 %v1207
    %v1314 = vunpack.c.l.b16 %v1208
    %v1315 = vunpack.c.h.b16 %v1208
    %v1316 = vunpack.c.l.b16 %v1209
    %v1317 = vunpack.c.h.b16 %v1209
    %v1318 = vpack.c.b16 %v1256, %v1254
    %v1319 = vpack.c.b16 %v1257, %v1255
    %v1320 = vpack.c.b16 %v1260, %v1258
    %v1321 = vpack.c.b16 %v1261, %v1259
    %v1322 = vpack.c.b16 %v1264, %v1262
    %v1323 = vpack.c.b16 %v1265, %v1263
    %v1324 = vpack.c.b16 %v1268, %v1266
    %v1325 = vpack.c.b16 %v1269, %v1267
    %v1326 = vpack.c.b16 %v1272, %v1270
    %v1327 = vpack.c.b16 %v1273, %v1271
    %v1328 = vpack.c.b16 %v1276, %v1274
    %v1329 = vpack.c.b16 %v1277, %v1275
    %v1330 = vpack.c.b16 %v1280, %v1278
    %v1331 = vpack.c.b16 %v1281, %v1279
    %v1332 = vpack.c.b16 %v1284, %v1282
    %v1333 = vpack.c.b16 %v1285, %v1283
    %v1334 = vpack.c.b16 %v1288, %v1286
    %v1335 = vpack.c.b16 %v1289, %v1287
    %v1336 = vpack.c.b16 %v1292, %v1290
    %v1337 = vpack.c.b16 %v1293, %v1291
    %v1338 = vpack.c.b16 %v1296, %v1294
    %v1339 = vpack.c.b16 %v1297, %v1295
    %v1340 = vpack.c.b16 %v1300, %v1298
    %v1341 = vpack.c.b16 %v1301, %v1299
    %v1342 = vpack.c.b16 %v1304, %v1302
    %v1343 = vpack.c.b16 %v1305, %v1303
    %v1344 = vpack.c.b16 %v1308, %v1306
    %v1345 = vpack.c.b16 %v1309, %v1307
    %v1346 = vpack.c.b16 %v1312, %v1310
    %v1347 = vpack.c.b16 %v1313, %v1311
    %v1348 = vpack.c.b16 %v1316, %v1314
    %v1349 = vpack.c.b16 %v1317, %v1315
    %1382 = vmatprep.subr.bf16.mxu0 %v1333
    %1383 = vmatpush1.bf16.msra.mxu0 %v1332
    %1384 = vmatprep.subr.bf16.mxu0 %v1331
    %1385 = vmatpush1.bf16.msra.mxu0 %v1330
    %1386 = vmatprep.subr.bf16.mxu0 %v1329
    %1387 = vmatpush1.bf16.msra.mxu0 %v1328
    %1388 = vmatprep.subr.bf16.mxu0 %v1327
    %1389 = vmatpush1.bf16.msra.mxu0 %v1326
    %1390 = vmatprep.subr.bf16.mxu0 %v1325
    %1391 = vmatpush1.bf16.msra.mxu0 %v1324
    %1392 = vmatprep.subr.bf16.mxu0 %v1323
    %1393 = vmatpush1.bf16.msra.mxu0 %v1322
    %1394 = vmatprep.subr.bf16.mxu0 %v1321
    %1395 = vmatpush1.bf16.msra.mxu0 %v1320
    %1396 = vmatprep.subr.bf16.mxu0 %v1319
    %1397 = vmatpush1.bf16.msra.mxu0 %v1318
    %1398 = vmatprep.subr.bf16.mxu0 %v1349
    %1399 = vmatpush2.bf16.msra.mxu0 %v1348
    %1400 = vmatprep.subr.bf16.mxu0 %v1347
    %1401 = vmatpush2.bf16.msra.mxu0 %v1346
    %1402 = vmatprep.subr.bf16.mxu0 %v1345
    %1403 = vmatpush2.bf16.msra.mxu0 %v1344
    %1404 = vmatprep.subr.bf16.mxu0 %v1343
    %1405 = vmatpush2.bf16.msra.mxu0 %v1342
    %1406 = vmatprep.subr.bf16.mxu0 %v1341
    %1407 = vmatpush2.bf16.msra.mxu0 %v1340
    %1408 = vmatprep.subr.bf16.mxu0 %v1339
    %1409 = vmatpush2.bf16.msra.mxu0 %v1338
    %1410 = vmatprep.subr.bf16.mxu0 %v1337
    %1411 = vmatpush2.bf16.msra.mxu0 %v1336
    %1412 = vmatprep.subr.bf16.mxu0 %v1335
    %1413 = vmatpush2.bf16.msra.mxu0 %v1334
    %1414 = vmatprep.mubr.bf16.mxu0 %v1177
    %1415 = vmatmul.mubr.bf16.gmra.mxu0 %v1176
    %v1416 = vpop.f32.mrf.mxu0
    %v1417 = vadd.f32 %v1215, %v1416
    %v1418 = vpop.f32.mrf.mxu0
    %v1419 = vadd.f32 %v1219, %v1418
    %v1420 = vpop.f32.mrf.mxu0
    %v1421 = vadd.f32 %v1215, %v1420
    %v1422 = vpop.f32.mrf.mxu0
    %v1423 = vadd.f32 %v1219, %v1422
    %1424 = vdwg.mxu0
    %v1425 = vmax.f32 %v1417, 0.0
    %v1426 = vmax.f32 %v1419, 0.0
    %v1427 = vmax.f32 %v1421, 0.0
    %v1428 = vmax.f32 %v1423, 0.0
    %v1429 = vpack.c.bf16 %v1427, %v1425
    %v1430 = vpack.c.bf16 %v1428, %v1426
    %v1431 = vld [vmem:[#allocation10] sm:$0xff]
    %v1432 = vld [vmem:[#allocation10 + $0x8] sm:$0xff]
    %v1433 = vld [vmem:[#allocation10 + $0x10] sm:$0xff]
    %v1434 = vld [vmem:[#allocation10 + $0x18] sm:$0xff]
    %v1435 = vld [vmem:[#allocation10 + $0x20] sm:$0xff]
    %v1436 = vld [vmem:[#allocation10 + $0x28] sm:$0xff]
    %v1437 = vld [vmem:[#allocation10 + $0x30] sm:$0xff]
    %v1438 = vld [vmem:[#allocation10 + $0x38] sm:$0xff]
    %v1439 = vld [vmem:[#allocation10 + $0x40] sm:$0xff]
    %v1440 = vld [vmem:[#allocation10 + $0x48] sm:$0xff]
    %v1441 = vld [vmem:[#allocation10 + $0x50] sm:$0xff]
    %v1442 = vld [vmem:[#allocation10 + $0x58] sm:$0xff]
    %v1443 = vld [vmem:[#allocation10 + $0x60] sm:$0xff]
    %v1444 = vld [vmem:[#allocation10 + $0x68] sm:$0xff]
    %v1445 = vld [vmem:[#allocation10 + $0x70] sm:$0xff]
    %v1446 = vld [vmem:[#allocation10 + $0x78] sm:$0xff]
    %v1447 = vld [vmem:[#allocation10 + $0x80] sm:$0xff]
    %v1448 = vld [vmem:[#allocation10 + $0x88] sm:$0xff]
    %v1449 = vld [vmem:[#allocation10 + $0x90] sm:$0xff]
    %v1450 = vld [vmem:[#allocation10 + $0x98] sm:$0xff]
    %v1451 = vld [vmem:[#allocation10 + $0xa0] sm:$0xff]
    %v1452 = vld [vmem:[#allocation10 + $0xa8] sm:$0xff]
    %v1453 = vld [vmem:[#allocation10 + $0xb0] sm:$0xff]
    %v1454 = vld [vmem:[#allocation10 + $0xb8] sm:$0xff]
    %v1455 = vld [vmem:[#allocation10 + $0xc0] sm:$0xff]
    %v1456 = vld [vmem:[#allocation10 + $0xc8] sm:$0xff]
    %v1457 = vld [vmem:[#allocation10 + $0xd0] sm:$0xff]
    %v1458 = vld [vmem:[#allocation10 + $0xd8] sm:$0xff]
    %v1459 = vld [vmem:[#allocation10 + $0xe0] sm:$0xff]
    %v1460 = vld [vmem:[#allocation10 + $0xe8] sm:$0xff]
    %v1461 = vld [vmem:[#allocation10 + $0xf0] sm:$0xff]
    %v1462 = vld [vmem:[#allocation10 + $0xf8] sm:$0xff]
    %v1463 = vld [vmem:[%s8] sm:$0x3]
    %v1465 = vlaneseq
    %v1466 = vshrl.u32 %v1465, 7
    %v1467 = vsub.s32 0, %v1466
    %v1468 = vrot.slane %v1463, %v1467
    %v1469 = vlaneseq
    %v1470 = vshrl.u32 %v1469, 7
    %v1471 = vsub.s32 1, %v1470
    %v1472 = vrot.slane %v1463, %v1471
    %v1507 = vunpack.c.l.b16 %v1431
    %v1508 = vunpack.c.h.b16 %v1431
    %v1509 = vunpack.c.l.b16 %v1432
    %v1510 = vunpack.c.h.b16 %v1432
    %v1511 = vunpack.c.l.b16 %v1433
    %v1512 = vunpack.c.h.b16 %v1433
    %v1513 = vunpack.c.l.b16 %v1434
    %v1514 = vunpack.c.h.b16 %v1434
    %v1515 = vunpack.c.l.b16 %v1435
    %v1516 = vunpack.c.h.b16 %v1435
    %v1517 = vunpack.c.l.b16 %v1436
    %v1518 = vunpack.c.h.b16 %v1436
    %v1519 = vunpack.c.l.b16 %v1437
    %v1520 = vunpack.c.h.b16 %v1437
    %v1521 = vunpack.c.l.b16 %v1438
    %v1522 = vunpack.c.h.b16 %v1438
    %v1523 = vunpack.c.l.b16 %v1439
    %v1524 = vunpack.c.h.b16 %v1439
    %v1525 = vunpack.c.l.b16 %v1440
    %v1526 = vunpack.c.h.b16 %v1440
    %v1527 = vunpack.c.l.b16 %v1441
    %v1528 = vunpack.c.h.b16 %v1441
    %v1529 = vunpack.c.l.b16 %v1442
    %v1530 = vunpack.c.h.b16 %v1442
    %v1531 = vunpack.c.l.b16 %v1443
    %v1532 = vunpack.c.h.b16 %v1443
    %v1533 = vunpack.c.l.b16 %v1444
    %v1534 = vunpack.c.h.b16 %v1444
    %v1535 = vunpack.c.l.b16 %v1445
    %v1536 = vunpack.c.h.b16 %v1445
    %v1537 = vunpack.c.l.b16 %v1446
    %v1538 = vunpack.c.h.b16 %v1446
    %v1539 = vunpack.c.l.b16 %v1447
    %v1540 = vunpack.c.h.b16 %v1447
    %v1541 = vunpack.c.l.b16 %v1448
    %v1542 = vunpack.c.h.b16 %v1448
    %v1543 = vunpack.c.l.b16 %v1449
    %v1544 = vunpack.c.h.b16 %v1449
    %v1545 = vunpack.c.l.b16 %v1450
    %v1546 = vunpack.c.h.b16 %v1450
    %v1547 = vunpack.c.l.b16 %v1451
    %v1548 = vunpack.c.h.b16 %v1451
    %v1549 = vunpack.c.l.b16 %v1452
    %v1550 = vunpack.c.h.b16 %v1452
    %v1551 = vunpack.c.l.b16 %v1453
    %v1552 = vunpack.c.h.b16 %v1453
    %v1553 = vunpack.c.l.b16 %v1454
    %v1554 = vunpack.c.h.b16 %v1454
    %v1555 = vunpack.c.l.b16 %v1455
    %v1556 = vunpack.c.h.b16 %v1455
    %v1557 = vunpack.c.l.b16 %v1456
    %v1558 = vunpack.c.h.b16 %v1456
    %v1559 = vunpack.c.l.b16 %v1457
    %v1560 = vunpack.c.h.b16 %v1457
    %v1561 = vunpack.c.l.b16 %v1458
    %v1562 = vunpack.c.h.b16 %v1458
    %v1563 = vunpack.c.l.b16 %v1459
    %v1564 = vunpack.c.h.b16 %v1459
    %v1565 = vunpack.c.l.b16 %v1460
    %v1566 = vunpack.c.h.b16 %v1460
    %v1567 = vunpack.c.l.b16 %v1461
    %v1568 = vunpack.c.h.b16 %v1461
    %v1569 = vunpack.c.l.b16 %v1462
    %v1570 = vunpack.c.h.b16 %v1462
    %v1571 = vpack.c.b16 %v1509, %v1507
    %v1572 = vpack.c.b16 %v1510, %v1508
    %v1573 = vpack.c.b16 %v1513, %v1511
    %v1574 = vpack.c.b16 %v1514, %v1512
    %v1575 = vpack.c.b16 %v1517, %v1515
    %v1576 = vpack.c.b16 %v1518, %v1516
    %v1577 = vpack.c.b16 %v1521, %v1519
    %v1578 = vpack.c.b16 %v1522, %v1520
    %v1579 = vpack.c.b16 %v1525, %v1523
    %v1580 = vpack.c.b16 %v1526, %v1524
    %v1581 = vpack.c.b16 %v1529, %v1527
    %v1582 = vpack.c.b16 %v1530, %v1528
    %v1583 = vpack.c.b16 %v1533, %v1531
    %v1584 = vpack.c.b16 %v1534, %v1532
    %v1585 = vpack.c.b16 %v1537, %v1535
    %v1586 = vpack.c.b16 %v1538, %v1536
    %v1587 = vpack.c.b16 %v1541, %v1539
    %v1588 = vpack.c.b16 %v1542, %v1540
    %v1589 = vpack.c.b16 %v1545, %v1543
    %v1590 = vpack.c.b16 %v1546, %v1544
    %v1591 = vpack.c.b16 %v1549, %v1547
    %v1592 = vpack.c.b16 %v1550, %v1548
    %v1593 = vpack.c.b16 %v1553, %v1551
    %v1594 = vpack.c.b16 %v1554, %v1552
    %v1595 = vpack.c.b16 %v1557, %v1555
    %v1596 = vpack.c.b16 %v1558, %v1556
    %v1597 = vpack.c.b16 %v1561, %v1559
    %v1598 = vpack.c.b16 %v1562, %v1560
    %v1599 = vpack.c.b16 %v1565, %v1563
    %v1600 = vpack.c.b16 %v1566, %v1564
    %v1601 = vpack.c.b16 %v1569, %v1567
    %v1602 = vpack.c.b16 %v1570, %v1568
    %1635 = vmatprep.subr.bf16.mxu0 %v1586
    %1636 = vmatpush1.bf16.msra.mxu0 %v1585
    %1637 = vmatprep.subr.bf16.mxu0 %v1584
    %1638 = vmatpush1.bf16.msra.mxu0 %v1583
    %1639 = vmatprep.subr.bf16.mxu0 %v1582
    %1640 = vmatpush1.bf16.msra.mxu0 %v1581
    %1641 = vmatprep.subr.bf16.mxu0 %v1580
    %1642 = vmatpush1.bf16.msra.mxu0 %v1579
    %1643 = vmatprep.subr.bf16.mxu0 %v1578
    %1644 = vmatpush1.bf16.msra.mxu0 %v1577
    %1645 = vmatprep.subr.bf16.mxu0 %v1576
    %1646 = vmatpush1.bf16.msra.mxu0 %v1575
    %1647 = vmatprep.subr.bf16.mxu0 %v1574
    %1648 = vmatpush1.bf16.msra.mxu0 %v1573
    %1649 = vmatprep.subr.bf16.mxu0 %v1572
    %1650 = vmatpush1.bf16.msra.mxu0 %v1571
    %1651 = vmatprep.subr.bf16.mxu0 %v1602
    %1652 = vmatpush2.bf16.msra.mxu0 %v1601
    %1653 = vmatprep.subr.bf16.mxu0 %v1600
    %1654 = vmatpush2.bf16.msra.mxu0 %v1599
    %1655 = vmatprep.subr.bf16.mxu0 %v1598
    %1656 = vmatpush2.bf16.msra.mxu0 %v1597
    %1657 = vmatprep.subr.bf16.mxu0 %v1596
    %1658 = vmatpush2.bf16.msra.mxu0 %v1595
    %1659 = vmatprep.subr.bf16.mxu0 %v1594
    %1660 = vmatpush2.bf16.msra.mxu0 %v1593
    %1661 = vmatprep.subr.bf16.mxu0 %v1592
    %1662 = vmatpush2.bf16.msra.mxu0 %v1591
    %1663 = vmatprep.subr.bf16.mxu0 %v1590
    %1664 = vmatpush2.bf16.msra.mxu0 %v1589
    %1665 = vmatprep.subr.bf16.mxu0 %v1588
    %1666 = vmatpush2.bf16.msra.mxu0 %v1587
    %1667 = vmatprep.mubr.bf16.mxu0 %v1430
    %1668 = vmatmul.mubr.bf16.gmra.mxu0 %v1429
    %v1669 = vpop.f32.mrf.mxu0
    %v1670 = vadd.f32 %v1468, %v1669
    %v1671 = vpop.f32.mrf.mxu0
    %v1672 = vadd.f32 %v1472, %v1671
    %v1673 = vpop.f32.mrf.mxu0
    %v1674 = vadd.f32 %v1468, %v1673
    %v1675 = vpop.f32.mrf.mxu0
    %v1676 = vadd.f32 %v1472, %v1675
    %1677 = vdwg.mxu0
    %v1678 = vmax.f32 %v1670, 0.0
    %v1679 = vmax.f32 %v1672, 0.0
    %v1680 = vmax.f32 %v1674, 0.0
    %v1681 = vmax.f32 %v1676, 0.0
    %v1682 = vpack.c.bf16 %v1680, %v1678
    %v1683 = vpack.c.bf16 %v1681, %v1679
    %v1684 = vld [vmem:[#allocation11] sm:$0xf]
    %v1685 = vld [vmem:[#allocation11 + $0x4] sm:$0xf]
    %v1686 = vld [vmem:[#allocation11 + $0x8] sm:$0xf]
    %v1687 = vld [vmem:[#allocation11 + $0xc] sm:$0xf]
    %v1688 = vld [vmem:[#allocation11 + $0x10] sm:$0xf]
    %v1689 = vld [vmem:[#allocation11 + $0x14] sm:$0xf]
    %v1690 = vld [vmem:[#allocation11 + $0x18] sm:$0xf]
    %v1691 = vld [vmem:[#allocation11 + $0x1c] sm:$0xf]
    %v1692 = vld [vmem:[#allocation11 + $0x20] sm:$0xf]
    %v1693 = vld [vmem:[#allocation11 + $0x24] sm:$0xf]
    %v1694 = vld [vmem:[#allocation11 + $0x28] sm:$0xf]
    %v1695 = vld [vmem:[#allocation11 + $0x2c] sm:$0xf]
    %v1696 = vld [vmem:[#allocation11 + $0x30] sm:$0xf]
    %v1697 = vld [vmem:[#allocation11 + $0x34] sm:$0xf]
    %v1698 = vld [vmem:[#allocation11 + $0x38] sm:$0xf]
    %v1699 = vld [vmem:[#allocation11 + $0x3c] sm:$0xf]
    %v1700 = vld [vmem:[#allocation11 + $0x40] sm:$0xf]
    %v1701 = vld [vmem:[#allocation11 + $0x44] sm:$0xf]
    %v1702 = vld [vmem:[#allocation11 + $0x48] sm:$0xf]
    %v1703 = vld [vmem:[#allocation11 + $0x4c] sm:$0xf]
    %v1704 = vld [vmem:[#allocation11 + $0x50] sm:$0xf]
    %v1705 = vld [vmem:[#allocation11 + $0x54] sm:$0xf]
    %v1706 = vld [vmem:[#allocation11 + $0x58] sm:$0xf]
    %v1707 = vld [vmem:[#allocation11 + $0x5c] sm:$0xf]
    %v1708 = vld [vmem:[#allocation11 + $0x60] sm:$0xf]
    %v1709 = vld [vmem:[#allocation11 + $0x64] sm:$0xf]
    %v1710 = vld [vmem:[#allocation11 + $0x68] sm:$0xf]
    %v1711 = vld [vmem:[#allocation11 + $0x6c] sm:$0xf]
    %v1712 = vld [vmem:[#allocation11 + $0x70] sm:$0xf]
    %v1713 = vld [vmem:[#allocation11 + $0x74] sm:$0xf]
    %v1714 = vld [vmem:[#allocation11 + $0x78] sm:$0xf]
    %v1715 = vld [vmem:[#allocation11 + $0x7c] sm:$0xf]
    %v1716 = vld [vmem:[%s10] sm:$0x1]
    %v1718 = vlaneseq
    %v1719 = vshrl.u32 %v1718, 7
    %v1720 = vsub.s32 0, %v1719
    %v1721 = vrot.slane %v1716, %v1720
    %v1755 = vunpack.c.l.b16 %v1684
    %v1756 = vunpack.c.l.b16 %v1685
    %v1757 = vunpack.c.l.b16 %v1686
    %v1758 = vunpack.c.l.b16 %v1687
    %v1759 = vunpack.c.l.b16 %v1688
    %v1760 = vunpack.c.l.b16 %v1689
    %v1761 = vunpack.c.l.b16 %v1690
    %v1762 = vunpack.c.l.b16 %v1691
    %v1763 = vunpack.c.l.b16 %v1692
    %v1764 = vunpack.c.l.b16 %v1693
    %v1765 = vunpack.c.l.b16 %v1694
    %v1766 = vunpack.c.l.b16 %v1695
    %v1767 = vunpack.c.l.b16 %v1696
    %v1768 = vunpack.c.l.b16 %v1697
    %v1769 = vunpack.c.l.b16 %v1698
    %v1770 = vunpack.c.l.b16 %v1699
    %v1771 = vunpack.c.l.b16 %v1700
    %v1772 = vunpack.c.l.b16 %v1701
    %v1773 = vunpack.c.l.b16 %v1702
    %v1774 = vunpack.c.l.b16 %v1703
    %v1775 = vunpack.c.l.b16 %v1704
    %v1776 = vunpack.c.l.b16 %v1705
    %v1777 = vunpack.c.l.b16 %v1706
    %v1778 = vunpack.c.l.b16 %v1707
    %v1779 = vunpack.c.l.b16 %v1708
    %v1780 = vunpack.c.l.b16 %v1709
    %v1781 = vunpack.c.l.b16 %v1710
    %v1782 = vunpack.c.l.b16 %v1711
    %v1783 = vunpack.c.l.b16 %v1712
    %v1784 = vunpack.c.l.b16 %v1713
    %v1785 = vunpack.c.l.b16 %v1714
    %v1786 = vunpack.c.l.b16 %v1715
    %v1787 = vpack.c.b16 %v1756, %v1755
    %v1788 = vpack.c.b16 %v1758, %v1757
    %v1789 = vpack.c.b16 %v1760, %v1759
    %v1790 = vpack.c.b16 %v1762, %v1761
    %v1791 = vpack.c.b16 %v1764, %v1763
    %v1792 = vpack.c.b16 %v1766, %v1765
    %v1793 = vpack.c.b16 %v1768, %v1767
    %v1794 = vpack.c.b16 %v1770, %v1769
    %v1795 = vpack.c.b16 %v1772, %v1771
    %v1796 = vpack.c.b16 %v1774, %v1773
    %v1797 = vpack.c.b16 %v1776, %v1775
    %v1798 = vpack.c.b16 %v1778, %v1777
    %v1799 = vpack.c.b16 %v1780, %v1779
    %v1800 = vpack.c.b16 %v1782, %v1781
    %v1801 = vpack.c.b16 %v1784, %v1783
    %v1802 = vpack.c.b16 %v1786, %v1785
    %1819 = vmatprep.subr.bf16.mxu0 0
    %1820 = vmatpush1.bf16.msra.mxu0 %v1794
    %1821 = vmatprep.subr.bf16.mxu0 0
    %1822 = vmatpush1.bf16.msra.mxu0 %v1793
    %1823 = vmatprep.subr.bf16.mxu0 0
    %1824 = vmatpush1.bf16.msra.mxu0 %v1792
    %1825 = vmatprep.subr.bf16.mxu0 0
    %1826 = vmatpush1.bf16.msra.mxu0 %v1791
    %1827 = vmatprep.subr.bf16.mxu0 0
    %1828 = vmatpush1.bf16.msra.mxu0 %v1790
    %1829 = vmatprep.subr.bf16.mxu0 0
    %1830 = vmatpush1.bf16.msra.mxu0 %v1789
    %1831 = vmatprep.subr.bf16.mxu0 0
    %1832 = vmatpush1.bf16.msra.mxu0 %v1788
    %1833 = vmatprep.subr.bf16.mxu0 0
    %1834 = vmatpush1.bf16.msra.mxu0 %v1787
    %1835 = vmatprep.subr.bf16.mxu0 0
    %1836 = vmatpush2.bf16.msra.mxu0 %v1802
    %1837 = vmatprep.subr.bf16.mxu0 0
    %1838 = vmatpush2.bf16.msra.mxu0 %v1801
    %1839 = vmatprep.subr.bf16.mxu0 0
    %1840 = vmatpush2.bf16.msra.mxu0 %v1800
    %1841 = vmatprep.subr.bf16.mxu0 0
    %1842 = vmatpush2.bf16.msra.mxu0 %v1799
    %1843 = vmatprep.subr.bf16.mxu0 0
    %1844 = vmatpush2.bf16.msra.mxu0 %v1798
    %1845 = vmatprep.subr.bf16.mxu0 0
    %1846 = vmatpush2.bf16.msra.mxu0 %v1797
    %1847 = vmatprep.subr.bf16.mxu0 0
    %1848 = vmatpush2.bf16.msra.mxu0 %v1796
    %1849 = vmatprep.subr.bf16.mxu0 0
    %1850 = vmatpush2.bf16.msra.mxu0 %v1795
    %1851 = vmatprep.mubr.bf16.mxu0 %v1683
    %1852 = vmatmul.mubr.bf16.gmra.mxu0 %v1682
    %v1853 = vpop.f32.mrf.mxu0
    %v1854 = vadd.f32 %v1721, %v1853
    %v1855 = vpop.f32.mrf.mxu0
    %v1856 = vpop.f32.mrf.mxu0
    %v1857 = vadd.f32 %v1721, %v1856
    %v1858 = vpop.f32.mrf.mxu0
    %1859 = vdwg.mxu0
    %1860 = vst [vmem:[#allocation13] sm:$0xff] %v1854
    %1861 = vst [vmem:[#allocation13 + $0x8] sm:$0xff] %v1857
    // Predicated region
    $region70: #{tpu_custom_call.1} parent=1 // pred_check
      _
    $region71: #{tpu_custom_call.1} parent=1 // pred_check_branch
      %1863 = sbr.rel (0) target = $region73
    $region72: #{tpu_custom_call.1} parent=1 // pred_region
      %s1865 = ssub.s32 256, 256
      %1866 = vsyncadd [#allocation4], %s1865
      %s1867 = sshll.u32 [#allocation13], 4
      %s1868 = int_to_ptr.vmem [resolvable:$true] %s1867
      %1873 = dma.vmem_to_hbm [thread:$0]  %s1868, 256, %s11, [#allocation4], 128, 128, 8
    $region73: #{tpu_custom_call.1} parent=1 // pred_fallthru
      _
    // Predicated region
    $region74: #{tpu_custom_call.1} parent=1 // pred_check
      _
    $region75: #{tpu_custom_call.1} parent=1 // pred_check_branch
      %1875 = sbr.rel (0) target = $region77
    $region76: #{tpu_custom_call.1} parent=1 // pred_region
      %1876 = dma.done [#allocation4], 256
    $region77: #{tpu_custom_call.1} parent=1 // pred_fallthru
      _
    %1877 = vsyncpa [#allocation3], 1
    %1878 = vsyncpa [#allocation6], 1
    %1879 = vsyncpa [#allocation9], 1
    %1880 = vsyncpa [#allocation12], 1
    %1881 = vsyncpa [#allocation4], 1

</llo_original>
